<compile_context>
chip_gen: v6e
topology: v6e:2x2x1
jax: 0.10.0
libtpu: 0.0.40
codegen_flags: <defaults>
</compile_context>

<pallas_src>
import math
import functools

import numpy as np
import jax
import jax.numpy as jnp
from jax import lax
from jax.experimental import pallas as pl
from jax.experimental.pallas import tpu as pltpu  # noqa: F401  (kept for the scaling-path TODOs)

# ----------------------- model hyper-params (small, consistent) ----------------
B = 2          # batch
T = 8          # sequence length (<= block_size; causal mask built for T)
N_EMBD = 32    # embedding dim (C)
N_HEAD = 4
HEAD_SIZE = N_EMBD // N_HEAD
HIDDEN = 4 * N_EMBD          # 128
LN_EPS = 1e-5
NEG_BIG = -1e30              # finite "-inf": exp -> 0, pad-safe

assert 3 * N_EMBD <= 128 and HIDDEN <= 128, "packed-slab layout assumes C<=42, 4C<=128"


def _block_kernel(n_head, head_size,
                  x_ref,      # (N, C)      flattened activations (N = B*T)
                  wa_ref,     # (2C, 128)   rows 0:C  = [wq*scale | wk | wv | 0pad], rows C:2C = w1
                  wb_ref,     # (C+4C, C)   rows 0:C  = wp, rows C:C+4C = w2
                  vec_ref,    # (8, 128)    rows 0..5 = g1,be1,bp,g2,be2,b2 (lanes 0:C); row 6 = b1
                  bias_ref,   # (N, N)      additive block-diagonal causal mask bias (0 / NEG_BIG)
                  o_ref):     # (N, C)
    n, c = x_ref.shape
    hidden = 4 * c

    x = x_ref[...]

    # small params: static slices of one packed slab (single DMA), bound once
    g1  = vec_ref[0:1, 0:c]
    be1 = vec_ref[1:2, 0:c]
    bp  = vec_ref[2:3, 0:c]
    g2  = vec_ref[3:4, 0:c]
    be2 = vec_ref[4:5, 0:c]
    b2  = vec_ref[5:6, 0:c]
    b1  = vec_ref[6:7, 0:hidden]
    bias = bias_ref[...]

    def layernorm(z, g, b):
        m = jnp.mean(z, axis=-1, keepdims=True)
        v = jnp.mean((z - m) ** 2, axis=-1, keepdims=True)
        return (z - m) * lax.rsqrt(v + LN_EPS) * g + b

    # ---- LayerNorm 1 + fused QKV projection (one MXU launch; scale folded into wq) ----
    xln = layernorm(x, g1, be1)
    qkv = jnp.dot(xln, wa_ref[0:c, :], preferred_element_type=jnp.float32)   # (N, 128)

    # ---- multi-head attention: heads unrolled as static lane slices (no transposes) ----
    ctxs = []
    for h in range(n_head):
        lo = h * head_size
        qh = qkv[:, lo:lo + head_size]                       # (N, hs)
        kh = qkv[:, c + lo:c + lo + head_size]               # (N, hs)
        vh = qkv[:, 2 * c + lo:2 * c + lo + head_size]       # (N, hs)
        s = jnp.einsum('qd,kd->qk', qh, kh,
                       preferred_element_type=jnp.float32)   # (N, N)
        s = s + bias                                          # block-diag causal mask (constant)
        s = s - jnp.max(s, axis=-1, keepdims=True)
        p = jnp.exp(s)
        p = p / jnp.sum(p, axis=-1, keepdims=True)            # exact divide (parity w/ reference)
        ctxs.append(jnp.dot(p, vh, preferred_element_type=jnp.float32))
    sa = jnp.concatenate(ctxs, axis=-1)                       # (N, C), head-concat order

    sa = jnp.dot(sa, wb_ref[0:c, :], preferred_element_type=jnp.float32) + bp
    x1 = x + sa                                               # residual 1

    # ---- LayerNorm 2 + FeedForward ----
    x2 = layernorm(x1, g2, be2)
    hid = jnp.dot(x2, wa_ref[c:2 * c, :], preferred_element_type=jnp.float32) + b1
    hid = jnp.maximum(hid, 0.0)                               # ReLU
    ff = jnp.dot(hid, wb_ref[c:c + hidden, :], preferred_element_type=jnp.float32) + b2

    o_ref[...] = (x1 + ff).astype(o_ref.dtype)                # residual 2, natural-shape store


def pack_params(p):
    """One-time packing of raw params into the kernel's fused slabs (done at init, not per call)."""
    C, H4 = N_EMBD, HIDDEN
    scale = 1.0 / math.sqrt(HEAD_SIZE)

    wa = np.zeros((2 * C, 128), np.float32)            # [wq*scale | wk | wv | 0] over w1
    wa[0:C, 0:C]       = np.asarray(p["wq"]) * scale
    wa[0:C, C:2 * C]   = np.asarray(p["wk"])
    wa[0:C, 2 * C:3 * C] = np.asarray(p["wv"])
    wa[C:2 * C, 0:H4]  = np.asarray(p["w1"])

    wb = np.zeros((C + H4, C), np.float32)             # wp stacked over w2
    wb[0:C]  = np.asarray(p["wp"])
    wb[C:]   = np.asarray(p["w2"])

    vec = np.zeros((8, 128), np.float32)
    vec[0, 0:C] = np.asarray(p["g1"]).reshape(-1)
    vec[1, 0:C] = np.asarray(p["be1"]).reshape(-1)
    vec[2, 0:C] = np.asarray(p["bp"]).reshape(-1)
    vec[3, 0:C] = np.asarray(p["g2"]).reshape(-1)
    vec[4, 0:C] = np.asarray(p["be2"]).reshape(-1)
    vec[5, 0:C] = np.asarray(p["b2"]).reshape(-1)
    vec[6, 0:H4] = np.asarray(p["b1"]).reshape(-1)

    return jnp.asarray(wa), jnp.asarray(wb), jnp.asarray(vec)


def make_mask_bias(batch, seq):
    """Trace-time constant: additive 0 / NEG_BIG block-diagonal causal mask for flattened rows."""
    n = batch * seq
    idx = np.arange(n)
    same_batch = (idx[:, None] // seq) == (idx[None, :] // seq)
    causal = idx[None, :] <= idx[:, None]
    return jnp.asarray(np.where(same_batch & causal, 0.0, NEG_BIG).astype(np.float32))


def transformer_block(x, packed, mask_bias):
    """x: (B, T, C) float32.  packed: (wa, wb, vec) from pack_params."""
    Bq, Tq, Cq = x.shape
    n = Bq * Tq
    wa, wb, vec = packed
    kernel = functools.partial(_block_kernel, N_HEAD, HEAD_SIZE)
    out = pl.pallas_call(
        kernel,
        out_shape=jax.ShapeDtypeStruct((n, Cq), x.dtype),
    )(x.reshape(n, Cq), wa, wb, vec, mask_bias)
    return out.reshape(Bq, Tq, Cq)


def init_params(key):
    ks = jax.random.split(key, 8)
    s = 0.02
    # PyTorch Linear stores (out, in); we store the transposed [in, out] layout
    # so the kernel computes x @ W directly.
    return dict(
        g1=jnp.ones((1, N_EMBD), jnp.float32),
        be1=jnp.zeros((1, N_EMBD), jnp.float32),
        wq=s * jax.random.normal(ks[0], (N_EMBD, N_EMBD), jnp.float32),
        wk=s * jax.random.normal(ks[1], (N_EMBD, N_EMBD), jnp.float32),
        wv=s * jax.random.normal(ks[2], (N_EMBD, N_EMBD), jnp.float32),
        wp=s * jax.random.normal(ks[3], (N_EMBD, N_EMBD), jnp.float32),
        bp=jnp.zeros((1, N_EMBD), jnp.float32),
        g2=jnp.ones((1, N_EMBD), jnp.float32),
        be2=jnp.zeros((1, N_EMBD), jnp.float32),
        w1=s * jax.random.normal(ks[4], (N_EMBD, HIDDEN), jnp.float32),
        b1=jnp.zeros((1, HIDDEN), jnp.float32),
        w2=s * jax.random.normal(ks[5], (HIDDEN, N_EMBD), jnp.float32),
        b2=jnp.zeros((1, N_EMBD), jnp.float32),
    )


def reference_block(x, p):
    """Pure-JAX reference (same math as the PyTorch Block, dropout = identity)."""
    def ln(z, g, b):
        m = jnp.mean(z, -1, keepdims=True)
        v = jnp.mean((z - m) ** 2, -1, keepdims=True)
        return (z - m) / jnp.sqrt(v + LN_EPS) * g + b

    xln = ln(x, p["g1"], p["be1"])
    q = xln @ p["wq"]; k = xln @ p["wk"]; v = xln @ p["wv"]
    Bq, Tq, Cq = x.shape
    qh = q.reshape(Bq, Tq, N_HEAD, HEAD_SIZE).transpose(0, 2, 1, 3)
    kh = k.reshape(Bq, Tq, N_HEAD, HEAD_SIZE).transpose(0, 2, 1, 3)
    vh = v.reshape(Bq, Tq, N_HEAD, HEAD_SIZE).transpose(0, 2, 1, 3)
    scores = jnp.einsum("bhqd,bhkd->bhqk", qh, kh) / math.sqrt(HEAD_SIZE)
    mask = jnp.tril(jnp.ones((Tq, Tq), bool))
    scores = jnp.where(mask, scores, -jnp.inf)
    w = jax.nn.softmax(scores, axis=-1)
    out = jnp.einsum("bhqk,bhkd->bhqd", w, vh).transpose(0, 2, 1, 3).reshape(Bq, Tq, Cq)
    x1 = x + (out @ p["wp"] + p["bp"])
    x2 = ln(x1, p["g2"], p["be2"])
    ff = jnp.maximum(x2 @ p["w1"] + p["b1"], 0.0) @ p["w2"] + p["b2"]
    return x1 + ff


if __name__ == "__main__":
    key = jax.random.PRNGKey(0)
    kx, kp = jax.random.split(key)
    x = jax.random.normal(kx, (B, T, N_EMBD), jnp.float32)
    params = init_params(kp)

    packed = pack_params(params)          # one-time fusion/packing (includes scale fold)
    mask_bias = make_mask_bias(B, T)      # trace-time constant mask

    out = transformer_block(x, packed, mask_bias)
    out = jax.block_until_ready(out)

    ref = reference_block(x, params)
    assert out.shape == (B, T, N_EMBD)
    assert jnp.allclose(out, ref, atol=1e-4, rtol=1e-4), "mismatch vs reference"

    print("KERNEL_OK")
</pallas_src>

<mosaic_0001>
module attributes {stable_mosaic.version = 11 : i64} {
  func.func @_block_kernel(%arg0: memref<16x32xf32, #tpu.memory_space<vmem>>, %arg1: memref<64x128xf32, #tpu.memory_space<vmem>>, %arg2: memref<160x32xf32, #tpu.memory_space<vmem>>, %arg3: memref<8x128xf32, #tpu.memory_space<vmem>>, %arg4: memref<16x16xf32, #tpu.memory_space<vmem>>, %arg5: memref<16x32xf32, #tpu.memory_space<vmem>>) attributes {dimension_semantics = [], scalar_prefetch = 0 : i64, scratch_operands = 0 : i64, tpu.core_type = #tpu.core_type<tc>} {
    %c0 = arith.constant 0 : index
    %c0_0 = arith.constant 0 : index
    %0 = vector.load %arg0[%c0, %c0_0] : memref<16x32xf32, #tpu.memory_space<vmem>>, vector<16x32xf32>
    %c0_1 = arith.constant 0 : index
    %c0_2 = arith.constant 0 : index
    %1 = vector.load %arg3[%c0_1, %c0_2] : memref<8x128xf32, #tpu.memory_space<vmem>>, vector<1x32xf32>
    %c1 = arith.constant 1 : index
    %c0_3 = arith.constant 0 : index
    %2 = vector.load %arg3[%c1, %c0_3] : memref<8x128xf32, #tpu.memory_space<vmem>>, vector<1x32xf32>
    %c2 = arith.constant 2 : index
    %c0_4 = arith.constant 0 : index
    %3 = vector.load %arg3[%c2, %c0_4] : memref<8x128xf32, #tpu.memory_space<vmem>>, vector<1x32xf32>
    %c3 = arith.constant 3 : index
    %c0_5 = arith.constant 0 : index
    %4 = vector.load %arg3[%c3, %c0_5] : memref<8x128xf32, #tpu.memory_space<vmem>>, vector<1x32xf32>
    %c4 = arith.constant 4 : index
    %c0_6 = arith.constant 0 : index
    %5 = vector.load %arg3[%c4, %c0_6] : memref<8x128xf32, #tpu.memory_space<vmem>>, vector<1x32xf32>
    %c5 = arith.constant 5 : index
    %c0_7 = arith.constant 0 : index
    %6 = vector.load %arg3[%c5, %c0_7] : memref<8x128xf32, #tpu.memory_space<vmem>>, vector<1x32xf32>
    %c6 = arith.constant 6 : index
    %c0_8 = arith.constant 0 : index
    %7 = vector.load %arg3[%c6, %c0_8] : memref<8x128xf32, #tpu.memory_space<vmem>>, vector<1x128xf32>
    %c0_9 = arith.constant 0 : index
    %c0_10 = arith.constant 0 : index
    %8 = vector.load %arg4[%c0_9, %c0_10] : memref<16x16xf32, #tpu.memory_space<vmem>>, vector<16x16xf32>
    %cst = arith.constant dense<0.000000e+00> : vector<16xf32>
    %9 = vector.multi_reduction <add>, %0, %cst [1] : vector<16x32xf32> to vector<16xf32>
    %10 = vector.shape_cast %9 : vector<16xf32> to vector<16x1xf32>
    %cst_11 = arith.constant 3.200000e+01 : f32
    %11 = vector.broadcast %cst_11 : f32 to vector<16x1xf32>
    %12 = arith.divf %10, %11 : vector<16x1xf32>
    %13 = vector.broadcast %12 : vector<16x1xf32> to vector<16x32xf32>
    %14 = arith.subf %0, %13 : vector<16x32xf32>
    %15 = arith.mulf %14, %14 : vector<16x32xf32>
    %cst_12 = arith.constant dense<0.000000e+00> : vector<16xf32>
    %16 = vector.multi_reduction <add>, %15, %cst_12 [1] : vector<16x32xf32> to vector<16xf32>
    %17 = vector.shape_cast %16 : vector<16xf32> to vector<16x1xf32>
    %cst_13 = arith.constant 3.200000e+01 : f32
    %18 = vector.broadcast %cst_13 : f32 to vector<16x1xf32>
    %19 = arith.divf %17, %18 : vector<16x1xf32>
    %20 = vector.broadcast %12 : vector<16x1xf32> to vector<16x32xf32>
    %21 = arith.subf %0, %20 : vector<16x32xf32>
    %cst_14 = arith.constant 9.99999974E-6 : f32
    %22 = vector.broadcast %cst_14 : f32 to vector<16x1xf32>
    %23 = arith.addf %19, %22 : vector<16x1xf32>
    %24 = math.rsqrt %23 : vector<16x1xf32>
    %25 = vector.broadcast %24 : vector<16x1xf32> to vector<16x32xf32>
    %26 = arith.mulf %21, %25 : vector<16x32xf32>
    %27 = vector.broadcast %1 : vector<1x32xf32> to vector<16x32xf32>
    %28 = arith.mulf %26, %27 : vector<16x32xf32>
    %29 = vector.broadcast %2 : vector<1x32xf32> to vector<16x32xf32>
    %30 = arith.addf %28, %29 : vector<16x32xf32>
    %c0_15 = arith.constant 0 : index
    %c0_16 = arith.constant 0 : index
    %31 = vector.load %arg1[%c0_15, %c0_16] : memref<64x128xf32, #tpu.memory_space<vmem>>, vector<32x128xf32>
    %cst_17 = arith.constant dense<0.000000e+00> : vector<16x128xf32>
    %32 = tpu.matmul %30, %31, %cst_17 {dimension_numbers = #tpu.dot_dimension_numbers<[1], [0], [0], [1], [0, 0, 1, 1], [], []>} : vector<16x32xf32>, vector<32x128xf32>, vector<16x128xf32> -> vector<16x128xf32>
    %33 = vector.extract_strided_slice %32 {offsets = [0, 0], sizes = [16, 8], strides = [1, 1]} : vector<16x128xf32> to vector<16x8xf32>
    %34 = vector.extract_strided_slice %32 {offsets = [0, 32], sizes = [16, 8], strides = [1, 1]} : vector<16x128xf32> to vector<16x8xf32>
    %35 = vector.extract_strided_slice %32 {offsets = [0, 64], sizes = [16, 8], strides = [1, 1]} : vector<16x128xf32> to vector<16x8xf32>
    "tpu.trace_start"() <{level = 10 : i32, message = "qd,kd->qk"}> : () -> ()
    %cst_18 = arith.constant dense<0.000000e+00> : vector<16x16xf32>
    %36 = tpu.matmul %33, %34, %cst_18 {dimension_numbers = #tpu.dot_dimension_numbers<[1], [1], [0], [0], [0, 0, 1, 0], [], []>} : vector<16x8xf32>, vector<16x8xf32>, vector<16x16xf32> -> vector<16x16xf32>
    "tpu.trace_stop"() : () -> ()
    %37 = arith.addf %36, %8 : vector<16x16xf32>
    %cst_19 = arith.constant dense<0xFF800000> : vector<16xf32>
    %38 = vector.multi_reduction <maximumf>, %37, %cst_19 [1] : vector<16x16xf32> to vector<16xf32>
    %39 = vector.shape_cast %38 : vector<16xf32> to vector<16x1xf32>
    %40 = vector.broadcast %39 : vector<16x1xf32> to vector<16x16xf32>
    %41 = arith.subf %37, %40 : vector<16x16xf32>
    %42 = math.exp %41 : vector<16x16xf32>
    %cst_20 = arith.constant dense<0.000000e+00> : vector<16xf32>
    %43 = vector.multi_reduction <add>, %42, %cst_20 [1] : vector<16x16xf32> to vector<16xf32>
    %44 = vector.shape_cast %43 : vector<16xf32> to vector<16x1xf32>
    %45 = vector.broadcast %44 : vector<16x1xf32> to vector<16x16xf32>
    %46 = arith.divf %42, %45 : vector<16x16xf32>
    %cst_21 = arith.constant dense<0.000000e+00> : vector<16x8xf32>
    %47 = tpu.matmul %46, %35, %cst_21 {dimension_numbers = #tpu.dot_dimension_numbers<[1], [0], [0], [1], [0, 0, 1, 1], [], []>} : vector<16x16xf32>, vector<16x8xf32>, vector<16x8xf32> -> vector<16x8xf32>
    %48 = vector.extract_strided_slice %32 {offsets = [0, 8], sizes = [16, 8], strides = [1, 1]} : vector<16x128xf32> to vector<16x8xf32>
    %49 = vector.extract_strided_slice %32 {offsets = [0, 40], sizes = [16, 8], strides = [1, 1]} : vector<16x128xf32> to vector<16x8xf32>
    %50 = vector.extract_strided_slice %32 {offsets = [0, 72], sizes = [16, 8], strides = [1, 1]} : vector<16x128xf32> to vector<16x8xf32>
    "tpu.trace_start"() <{level = 10 : i32, message = "qd,kd->qk"}> : () -> ()
    %cst_22 = arith.constant dense<0.000000e+00> : vector<16x16xf32>
    %51 = tpu.matmul %48, %49, %cst_22 {dimension_numbers = #tpu.dot_dimension_numbers<[1], [1], [0], [0], [0, 0, 1, 0], [], []>} : vector<16x8xf32>, vector<16x8xf32>, vector<16x16xf32> -> vector<16x16xf32>
    "tpu.trace_stop"() : () -> ()
    %52 = arith.addf %51, %8 : vector<16x16xf32>
    %cst_23 = arith.constant dense<0xFF800000> : vector<16xf32>
    %53 = vector.multi_reduction <maximumf>, %52, %cst_23 [1] : vector<16x16xf32> to vector<16xf32>
    %54 = vector.shape_cast %53 : vector<16xf32> to vector<16x1xf32>
    %55 = vector.broadcast %54 : vector<16x1xf32> to vector<16x16xf32>
    %56 = arith.subf %52, %55 : vector<16x16xf32>
    %57 = math.exp %56 : vector<16x16xf32>
    %cst_24 = arith.constant dense<0.000000e+00> : vector<16xf32>
    %58 = vector.multi_reduction <add>, %57, %cst_24 [1] : vector<16x16xf32> to vector<16xf32>
    %59 = vector.shape_cast %58 : vector<16xf32> to vector<16x1xf32>
    %60 = vector.broadcast %59 : vector<16x1xf32> to vector<16x16xf32>
    %61 = arith.divf %57, %60 : vector<16x16xf32>
    %cst_25 = arith.constant dense<0.000000e+00> : vector<16x8xf32>
    %62 = tpu.matmul %61, %50, %cst_25 {dimension_numbers = #tpu.dot_dimension_numbers<[1], [0], [0], [1], [0, 0, 1, 1], [], []>} : vector<16x16xf32>, vector<16x8xf32>, vector<16x8xf32> -> vector<16x8xf32>
    %63 = vector.extract_strided_slice %32 {offsets = [0, 16], sizes = [16, 8], strides = [1, 1]} : vector<16x128xf32> to vector<16x8xf32>
    %64 = vector.extract_strided_slice %32 {offsets = [0, 48], sizes = [16, 8], strides = [1, 1]} : vector<16x128xf32> to vector<16x8xf32>
    %65 = vector.extract_strided_slice %32 {offsets = [0, 80], sizes = [16, 8], strides = [1, 1]} : vector<16x128xf32> to vector<16x8xf32>
    "tpu.trace_start"() <{level = 10 : i32, message = "qd,kd->qk"}> : () -> ()
    %cst_26 = arith.constant dense<0.000000e+00> : vector<16x16xf32>
    %66 = tpu.matmul %63, %64, %cst_26 {dimension_numbers = #tpu.dot_dimension_numbers<[1], [1], [0], [0], [0, 0, 1, 0], [], []>} : vector<16x8xf32>, vector<16x8xf32>, vector<16x16xf32> -> vector<16x16xf32>
    "tpu.trace_stop"() : () -> ()
    %67 = arith.addf %66, %8 : vector<16x16xf32>
    %cst_27 = arith.constant dense<0xFF800000> : vector<16xf32>
    %68 = vector.multi_reduction <maximumf>, %67, %cst_27 [1] : vector<16x16xf32> to vector<16xf32>
    %69 = vector.shape_cast %68 : vector<16xf32> to vector<16x1xf32>
    %70 = vector.broadcast %69 : vector<16x1xf32> to vector<16x16xf32>
    %71 = arith.subf %67, %70 : vector<16x16xf32>
    %72 = math.exp %71 : vector<16x16xf32>
    %cst_28 = arith.constant dense<0.000000e+00> : vector<16xf32>
    %73 = vector.multi_reduction <add>, %72, %cst_28 [1] : vector<16x16xf32> to vector<16xf32>
    %74 = vector.shape_cast %73 : vector<16xf32> to vector<16x1xf32>
    %75 = vector.broadcast %74 : vector<16x1xf32> to vector<16x16xf32>
    %76 = arith.divf %72, %75 : vector<16x16xf32>
    %cst_29 = arith.constant dense<0.000000e+00> : vector<16x8xf32>
    %77 = tpu.matmul %76, %65, %cst_29 {dimension_numbers = #tpu.dot_dimension_numbers<[1], [0], [0], [1], [0, 0, 1, 1], [], []>} : vector<16x16xf32>, vector<16x8xf32>, vector<16x8xf32> -> vector<16x8xf32>
    %78 = vector.extract_strided_slice %32 {offsets = [0, 24], sizes = [16, 8], strides = [1, 1]} : vector<16x128xf32> to vector<16x8xf32>
    %79 = vector.extract_strided_slice %32 {offsets = [0, 56], sizes = [16, 8], strides = [1, 1]} : vector<16x128xf32> to vector<16x8xf32>
    %80 = vector.extract_strided_slice %32 {offsets = [0, 88], sizes = [16, 8], strides = [1, 1]} : vector<16x128xf32> to vector<16x8xf32>
    "tpu.trace_start"() <{level = 10 : i32, message = "qd,kd->qk"}> : () -> ()
    %cst_30 = arith.constant dense<0.000000e+00> : vector<16x16xf32>
    %81 = tpu.matmul %78, %79, %cst_30 {dimension_numbers = #tpu.dot_dimension_numbers<[1], [1], [0], [0], [0, 0, 1, 0], [], []>} : vector<16x8xf32>, vector<16x8xf32>, vector<16x16xf32> -> vector<16x16xf32>
    "tpu.trace_stop"() : () -> ()
    %82 = arith.addf %81, %8 : vector<16x16xf32>
    %cst_31 = arith.constant dense<0xFF800000> : vector<16xf32>
    %83 = vector.multi_reduction <maximumf>, %82, %cst_31 [1] : vector<16x16xf32> to vector<16xf32>
    %84 = vector.shape_cast %83 : vector<16xf32> to vector<16x1xf32>
    %85 = vector.broadcast %84 : vector<16x1xf32> to vector<16x16xf32>
    %86 = arith.subf %82, %85 : vector<16x16xf32>
    %87 = math.exp %86 : vector<16x16xf32>
    %cst_32 = arith.constant dense<0.000000e+00> : vector<16xf32>
    %88 = vector.multi_reduction <add>, %87, %cst_32 [1] : vector<16x16xf32> to vector<16xf32>
    %89 = vector.shape_cast %88 : vector<16xf32> to vector<16x1xf32>
    %90 = vector.broadcast %89 : vector<16x1xf32> to vector<16x16xf32>
    %91 = arith.divf %87, %90 : vector<16x16xf32>
    %cst_33 = arith.constant dense<0.000000e+00> : vector<16x8xf32>
    %92 = tpu.matmul %91, %80, %cst_33 {dimension_numbers = #tpu.dot_dimension_numbers<[1], [0], [0], [1], [0, 0, 1, 1], [], []>} : vector<16x16xf32>, vector<16x8xf32>, vector<16x8xf32> -> vector<16x8xf32>
    %93 = tpu.concatenate %47, %62, %77, %92 in 1 : vector<16x8xf32>, vector<16x8xf32>, vector<16x8xf32>, vector<16x8xf32> -> vector<16x32xf32>
    %c0_34 = arith.constant 0 : index
    %c0_35 = arith.constant 0 : index
    %94 = vector.load %arg2[%c0_34, %c0_35] : memref<160x32xf32, #tpu.memory_space<vmem>>, vector<32x32xf32>
    %cst_36 = arith.constant dense<0.000000e+00> : vector<16x32xf32>
    %95 = tpu.matmul %93, %94, %cst_36 {dimension_numbers = #tpu.dot_dimension_numbers<[1], [0], [0], [1], [0, 0, 1, 1], [], []>} : vector<16x32xf32>, vector<32x32xf32>, vector<16x32xf32> -> vector<16x32xf32>
    %96 = vector.broadcast %3 : vector<1x32xf32> to vector<16x32xf32>
    %97 = arith.addf %95, %96 : vector<16x32xf32>
    %98 = arith.addf %0, %97 : vector<16x32xf32>
    %cst_37 = arith.constant dense<0.000000e+00> : vector<16xf32>
    %99 = vector.multi_reduction <add>, %98, %cst_37 [1] : vector<16x32xf32> to vector<16xf32>
    %100 = vector.shape_cast %99 : vector<16xf32> to vector<16x1xf32>
    %cst_38 = arith.constant 3.200000e+01 : f32
    %101 = vector.broadcast %cst_38 : f32 to vector<16x1xf32>
    %102 = arith.divf %100, %101 : vector<16x1xf32>
    %103 = vector.broadcast %102 : vector<16x1xf32> to vector<16x32xf32>
    %104 = arith.subf %98, %103 : vector<16x32xf32>
    %105 = arith.mulf %104, %104 : vector<16x32xf32>
    %cst_39 = arith.constant dense<0.000000e+00> : vector<16xf32>
    %106 = vector.multi_reduction <add>, %105, %cst_39 [1] : vector<16x32xf32> to vector<16xf32>
    %107 = vector.shape_cast %106 : vector<16xf32> to vector<16x1xf32>
    %cst_40 = arith.constant 3.200000e+01 : f32
    %108 = vector.broadcast %cst_40 : f32 to vector<16x1xf32>
    %109 = arith.divf %107, %108 : vector<16x1xf32>
    %110 = vector.broadcast %102 : vector<16x1xf32> to vector<16x32xf32>
    %111 = arith.subf %98, %110 : vector<16x32xf32>
    %cst_41 = arith.constant 9.99999974E-6 : f32
    %112 = vector.broadcast %cst_41 : f32 to vector<16x1xf32>
    %113 = arith.addf %109, %112 : vector<16x1xf32>
    %114 = math.rsqrt %113 : vector<16x1xf32>
    %115 = vector.broadcast %114 : vector<16x1xf32> to vector<16x32xf32>
    %116 = arith.mulf %111, %115 : vector<16x32xf32>
    %117 = vector.broadcast %4 : vector<1x32xf32> to vector<16x32xf32>
    %118 = arith.mulf %116, %117 : vector<16x32xf32>
    %119 = vector.broadcast %5 : vector<1x32xf32> to vector<16x32xf32>
    %120 = arith.addf %118, %119 : vector<16x32xf32>
    %c32 = arith.constant 32 : index
    %c0_42 = arith.constant 0 : index
    %121 = vector.load %arg1[%c32, %c0_42] : memref<64x128xf32, #tpu.memory_space<vmem>>, vector<32x128xf32>
    %cst_43 = arith.constant dense<0.000000e+00> : vector<16x128xf32>
    %122 = tpu.matmul %120, %121, %cst_43 {dimension_numbers = #tpu.dot_dimension_numbers<[1], [0], [0], [1], [0, 0, 1, 1], [], []>} : vector<16x32xf32>, vector<32x128xf32>, vector<16x128xf32> -> vector<16x128xf32>
    %123 = vector.broadcast %7 : vector<1x128xf32> to vector<16x128xf32>
    %124 = arith.addf %122, %123 : vector<16x128xf32>
    %cst_44 = arith.constant 0.000000e+00 : f32
    %125 = vector.broadcast %cst_44 : f32 to vector<16x128xf32>
    %126 = arith.maximumf %124, %125 : vector<16x128xf32>
    %c32_45 = arith.constant 32 : index
    %c0_46 = arith.constant 0 : index
    %127 = vector.load %arg2[%c32_45, %c0_46] : memref<160x32xf32, #tpu.memory_space<vmem>>, vector<128x32xf32>
    %cst_47 = arith.constant dense<0.000000e+00> : vector<16x32xf32>
    %128 = tpu.matmul %126, %127, %cst_47 {dimension_numbers = #tpu.dot_dimension_numbers<[1], [0], [0], [1], [0, 0, 1, 1], [], []>} : vector<16x128xf32>, vector<128x32xf32>, vector<16x32xf32> -> vector<16x32xf32>
    %129 = vector.broadcast %6 : vector<1x32xf32> to vector<16x32xf32>
    %130 = arith.addf %128, %129 : vector<16x32xf32>
    %131 = arith.addf %98, %130 : vector<16x32xf32>
    %c0_48 = arith.constant 0 : index
    %c0_49 = arith.constant 0 : index
    %132 = vector.load %arg5[%c0_48, %c0_49] : memref<16x32xf32, #tpu.memory_space<vmem>>, vector<16x32xf32>
    tpu.vector_store %arg5[%c0_48, %c0_49], %131 {strides = array<i32>} : memref<16x32xf32, #tpu.memory_space<vmem>>, vector<16x32xf32>,
    return
  }
}

</mosaic_0001>

<llo_original>
// kernel: tpu_custom_call.1
$region0: #{tpu_custom_call.1}
  #allocation0 [shape = 'u32[]', space=smem, size = 0x4, offset = 0x4, fixed_abs, tag = 'smem constant byte address 0x4 - core index']
  #allocation1 [shape = 'u32[144,128]{1,0:T(1,128)}', space=vmem, size = 0x12000, scoped, tag = 'internal scratch']
  %s0 = inlined_call_operand.vmem [shape: f32[16,32], index: 0, kind: input, shape index: {}]
  %s1 = inlined_call_operand.vmem [shape: f32[64,128], index: 1, kind: input, shape index: {}]
  %s2 = inlined_call_operand.vmem [shape: f32[160,32], index: 2, kind: input, shape index: {}]
  %s3 = inlined_call_operand.vmem [shape: f32[8,128], index: 3, kind: input, shape index: {}]
  %s4 = inlined_call_operand.vmem [shape: f32[16,16], index: 4, kind: input, shape index: {}]
  %s5 = inlined_call_operand.hbm [shape: f32[16,32], index: 5, kind: output, shape index: {}]
  %s6 = sld [smem:[#allocation0]]
  $region30: #{tpu_custom_call.1} parent=0
    _
  %s8 = ssub.s32 1, %s6
  %s9 = scalar_select 0, %s8, %s6
  $region1: #{tpu_custom_call.1} parent=0
    #allocation2 [shape = 'u8[8192]{0}', space=vmem, size = 0x2000, scoped, tag = 'output window, operand 0, single buffered']
    #allocation3 [shape = 's32[1]{0}', space=sflag, size = 0x4, scoped, tag = 'scoped memory for tpu_custom_call.1']
    %10 = vsyncpa [#allocation3], 0
    // Predicated region
    $region2: #{tpu_custom_call.1} parent=1 // pred_check
      _
    $region3: #{tpu_custom_call.1} parent=1 // pred_check_branch
      %12 = sbr.rel (0) target = $region5
    $region4: #{tpu_custom_call.1} parent=1 // pred_region
      _
    $region5: #{tpu_custom_call.1} parent=1 // pred_fallthru
      _
    // Predicated region
    $region6: #{tpu_custom_call.1} parent=1 // pred_check
      _
    $region7: #{tpu_custom_call.1} parent=1 // pred_check_branch
      %14 = sbr.rel (0) target = $region9
    $region8: #{tpu_custom_call.1} parent=1 // pred_region
      _
    $region9: #{tpu_custom_call.1} parent=1 // pred_fallthru
      _
    // Predicated region
    $region10: #{tpu_custom_call.1} parent=1 // pred_check
      _
    $region11: #{tpu_custom_call.1} parent=1 // pred_check_branch
      %16 = sbr.rel (0) target = $region13
    $region12: #{tpu_custom_call.1} parent=1 // pred_region
      _
    $region13: #{tpu_custom_call.1} parent=1 // pred_fallthru
      _
    // Predicated region
    $region14: #{tpu_custom_call.1} parent=1 // pred_check
      _
    $region15: #{tpu_custom_call.1} parent=1 // pred_check_branch
      %18 = sbr.rel (0) target = $region17
    $region16: #{tpu_custom_call.1} parent=1 // pred_region
      _
    $region17: #{tpu_custom_call.1} parent=1 // pred_fallthru
      _
    // Predicated region
    $region18: #{tpu_custom_call.1} parent=1 // pred_check
      _
    $region19: #{tpu_custom_call.1} parent=1 // pred_check_branch
      %20 = sbr.rel (0) target = $region21
    $region20: #{tpu_custom_call.1} parent=1 // pred_region
      _
    $region21: #{tpu_custom_call.1} parent=1 // pred_fallthru
      _
    %v21 = vld [vmem:[%s0] sm:$0xff]
    %v22 = vld [vmem:[%s0 + $0x8] sm:$0xff]
    %v23 = vld [vmem:[%s3] sm:$0x1]
    %v24 = vld [vmem:[%s3 + $0x1] sm:$0x1]
    %v25 = vld [vmem:[%s3 + $0x2] sm:$0x1]
    %v26 = vld [vmem:[%s3 + $0x3] sm:$0x1]
    %v27 = vld [vmem:[%s3 + $0x4] sm:$0x1]
    %v28 = vld [vmem:[%s3 + $0x5] sm:$0x1]
    %v29 = vld [vmem:[%s3 + $0x6] sm:$0x1]
    %v30 = vld [vmem:[%s4] sm:$0xff]
    %v31 = vld [vmem:[%s4 + $0x8] sm:$0xff]
    %vm32 = vcmask 261120
    %v33 = vsel %vm32, %v21, 0.0
    %34 = vadd.xlane.f32.xlu0 %v33
    %v35 = vpop.xlane.xlu0 %34
    %v36 = vsel %vm32, %v22, 0.0
    %37 = vadd.xlane.f32.xlu0 %v36
    %v38 = vpop.xlane.xlu0 %37
    %v39 = vrcp.pop 32.0
    %v40 = vmul.f32 %v35, %v39
    %v41 = vmul.f32 %v38, %v39
    %v42 = vsub.f32 %v21, %v40
    %v43 = vsub.f32 %v22, %v41
    %v44 = vmul.f32 %v42, %v42
    %v45 = vmul.f32 %v43, %v43
    %v46 = vsel %vm32, %v44, 0.0
    %47 = vadd.xlane.f32.xlu0 %v46
    %v48 = vpop.xlane.xlu0 %47
    %v49 = vsel %vm32, %v45, 0.0
    %50 = vadd.xlane.f32.xlu0 %v49
    %v51 = vpop.xlane.xlu0 %50
    %v52 = vmul.f32 %v48, %v39
    %v53 = vmul.f32 %v51, %v39
    %v54 = vadd.f32 %v52, 1e-05
    %v55 = vadd.f32 %v53, 1e-05
    %v56 = vrsqrt.pop %v54
    %v57 = vrsqrt.pop %v55
    %v58 = vmul.f32 %v42, %v56
    %v59 = vmul.f32 %v43, %v57
    %v60 = vlaneseq
    %v61 = vshrl.u32 %v60, 7
    %v62 = vsub.s32 0, %v61
    %v63 = vrot.slane %v23, %v62
    %v64 = vmul.f32 %v58, %v63
    %v65 = vmul.f32 %v59, %v63
    %v66 = vlaneseq
    %v67 = vshrl.u32 %v66, 7
    %v68 = vsub.s32 0, %v67
    %v69 = vrot.slane %v24, %v68
    %v70 = vadd.f32 %v64, %v69
    %v71 = vadd.f32 %v65, %v69
    %v72 = vld [vmem:[%s1] sm:$0xff]
    %v73 = vld [vmem:[%s1 + $0x8] sm:$0xff]
    %v74 = vld [vmem:[%s1 + $0x10] sm:$0xff]
    %v75 = vld [vmem:[%s1 + $0x18] sm:$0xff]
    %v77 = vsel %vm32, %v70, 0
    %v80 = vsel %vm32, %v71, 0
    %82 = vmatprep.subr.mxu0 0.0
    %83 = vmatpush1.msra.mxu0 0.0
    %84 = vmatprep.subr.mxu0 0.0
    %85 = vmatpush1.msra.mxu0 0.0
    %86 = vmatprep.subr.mxu0 0.0
    %87 = vmatpush1.msra.mxu0 0.0
    %88 = vmatprep.subr.mxu0 0.0
    %89 = vmatpush1.msra.mxu0 0.0
    %90 = vmatprep.subr.mxu0 0.0
    %91 = vmatpush1.msra.mxu0 0.0
    %92 = vmatprep.subr.mxu0 0.0
    %93 = vmatpush1.msra.mxu0 0.0
    %94 = vmatprep.subr.mxu0 0.0
    %95 = vmatpush1.msra.mxu0 0.0
    %96 = vmatprep.subr.mxu0 0.0
    %97 = vmatpush1.msra.mxu0 0.0
    %98 = vmatprep.subr.mxu0 0.0
    %99 = vmatpush1.msra.mxu0 0.0
    %100 = vmatprep.subr.mxu0 0.0
    %101 = vmatpush1.msra.mxu0 0.0
    %102 = vmatprep.subr.mxu0 0.0
    %103 = vmatpush1.msra.mxu0 0.0
    %104 = vmatprep.subr.mxu0 0.0
    %105 = vmatpush1.msra.mxu0 0.0
    %106 = vmatprep.subr.mxu0 0.0
    %107 = vmatpush1.msra.mxu0 %v75
    %108 = vmatprep.subr.mxu0 0.0
    %109 = vmatpush1.msra.mxu0 %v74
    %110 = vmatprep.subr.mxu0 0.0
    %111 = vmatpush1.msra.mxu0 %v73
    %112 = vmatprep.subr.mxu0 0.0
    %113 = vmatpush1.msra.mxu0 %v72
    %114 = vmatprep.subr.mxu0 0.0
    %115 = vmatpush2.msra.mxu0 0.0
    %116 = vmatprep.subr.mxu0 0.0
    %117 = vmatpush2.msra.mxu0 0.0
    %118 = vmatprep.subr.mxu0 0.0
    %119 = vmatpush2.msra.mxu0 0.0
    %120 = vmatprep.subr.mxu0 0.0
    %121 = vmatpush2.msra.mxu0 0.0
    %122 = vmatprep.subr.mxu0 0.0
    %123 = vmatpush2.msra.mxu0 0.0
    %124 = vmatprep.subr.mxu0 0.0
    %125 = vmatpush2.msra.mxu0 0.0
    %126 = vmatprep.subr.mxu0 0.0
    %127 = vmatpush2.msra.mxu0 0.0
    %128 = vmatprep.subr.mxu0 0.0
    %129 = vmatpush2.msra.mxu0 0.0
    %130 = vmatprep.subr.mxu0 0.0
    %131 = vmatpush2.msra.mxu0 0.0
    %132 = vmatprep.subr.mxu0 0.0
    %133 = vmatpush2.msra.mxu0 0.0
    %134 = vmatprep.subr.mxu0 0.0
    %135 = vmatpush2.msra.mxu0 0.0
    %136 = vmatprep.subr.mxu0 0.0
    %137 = vmatpush2.msra.mxu0 0.0
    %138 = vmatprep.subr.mxu0 0.0
    %139 = vmatpush2.msra.mxu0 0.0
    %140 = vmatprep.subr.mxu0 0.0
    %141 = vmatpush2.msra.mxu0 0.0
    %142 = vmatprep.subr.mxu0 0.0
    %143 = vmatpush2.msra.mxu0 0.0
    %144 = vmatprep.subr.mxu0 0.0
    %145 = vmatpush2.msra.mxu0 0.0
    %146 = vmatprep.mubr.f32.mxu0 0.0
    %147 = vmatmul.mubr.f32.gmra.mxu0 %v77
    %v148 = vpop.f32.mrf.mxu0
    %v149 = vadd.f32 0.0, %v148
    %v150 = vpop.f32.mrf.mxu0
    %151 = vmatprep.mubr.f32.mxu0 0.0
    %152 = vmatmul.mubr.f32.gmra.mxu0 %v80
    %v153 = vpop.f32.mrf.mxu0
    %v154 = vadd.f32 0.0, %v153
    %v155 = vpop.f32.mrf.mxu0
    %156 = vdwg.mxu0
    %159 = vrot.lane.b32.xlu0 %v149, 96
    %v160 = vpop.permute.xlu0 %159
    %161 = vrot.lane.b32.xlu0 %v154, 96
    %v162 = vpop.permute.xlu0 %161
    %vm163 = vcmask 64512
    %v164 = vsel %vm163, %v149, 0
    %v166 = vsel %vm163, %v154, 0
    %v168 = vsel %vm163, %v160, 0
    %v170 = vsel %vm163, %v162, 0
    %172 = vmatprep.subr.mxu0 0.0
    %173 = vmatpush1.xpose.msra.mxu0 0.0
    %174 = vmatprep.subr.mxu0 0.0
    %175 = vmatpush1.xpose.msra.mxu0 0.0
    %176 = vmatprep.subr.mxu0 0.0
    %177 = vmatpush1.xpose.msra.mxu0 0.0
    %178 = vmatprep.subr.mxu0 0.0
    %179 = vmatpush1.xpose.msra.mxu0 0.0
    %180 = vmatprep.subr.mxu0 0.0
    %181 = vmatpush1.xpose.msra.mxu0 0.0
    %182 = vmatprep.subr.mxu0 0.0
    %183 = vmatpush1.xpose.msra.mxu0 0.0
    %184 = vmatprep.subr.mxu0 0.0
    %185 = vmatpush1.xpose.msra.mxu0 0.0
    %186 = vmatprep.subr.mxu0 0.0
    %187 = vmatpush1.xpose.msra.mxu0 0.0
    %188 = vmatprep.subr.mxu0 0.0
    %189 = vmatpush1.xpose.msra.mxu0 0.0
    %190 = vmatprep.subr.mxu0 0.0
    %191 = vmatpush1.xpose.msra.mxu0 0.0
    %192 = vmatprep.subr.mxu0 0.0
    %193 = vmatpush1.xpose.msra.mxu0 0.0
    %194 = vmatprep.subr.mxu0 0.0
    %195 = vmatpush1.xpose.msra.mxu0 0.0
    %196 = vmatprep.subr.mxu0 0.0
    %197 = vmatpush1.xpose.msra.mxu0 0.0
    %198 = vmatprep.subr.mxu0 0.0
    %199 = vmatpush1.xpose.msra.mxu0 0.0
    %200 = vmatprep.subr.mxu0 0.0
    %201 = vmatpush1.xpose.msra.mxu0 %v170
    %202 = vmatprep.subr.mxu0 0.0
    %203 = vmatpush1.xpose.msra.mxu0 %v168
    %204 = vmatprep.subr.mxu0 0.0
    %205 = vmatpush2.xpose.msra.mxu0 0.0
    %206 = vmatprep.subr.mxu0 0.0
    %207 = vmatpush2.xpose.msra.mxu0 0.0
    %208 = vmatprep.subr.mxu0 0.0
    %209 = vmatpush2.xpose.msra.mxu0 0.0
    %210 = vmatprep.subr.mxu0 0.0
    %211 = vmatpush2.xpose.msra.mxu0 0.0
    %212 = vmatprep.subr.mxu0 0.0
    %213 = vmatpush2.xpose.msra.mxu0 0.0
    %214 = vmatprep.subr.mxu0 0.0
    %215 = vmatpush2.xpose.msra.mxu0 0.0
    %216 = vmatprep.subr.mxu0 0.0
    %217 = vmatpush2.xpose.msra.mxu0 0.0
    %218 = vmatprep.subr.mxu0 0.0
    %219 = vmatpush2.xpose.msra.mxu0 0.0
    %220 = vmatprep.subr.mxu0 0.0
    %221 = vmatpush2.xpose.msra.mxu0 0.0
    %222 = vmatprep.subr.mxu0 0.0
    %223 = vmatpush2.xpose.msra.mxu0 0.0
    %224 = vmatprep.subr.mxu0 0.0
    %225 = vmatpush2.xpose.msra.mxu0 0.0
    %226 = vmatprep.subr.mxu0 0.0
    %227 = vmatpush2.xpose.msra.mxu0 0.0
    %228 = vmatprep.subr.mxu0 0.0
    %229 = vmatpush2.xpose.msra.mxu0 0.0
    %230 = vmatprep.subr.mxu0 0.0
    %231 = vmatpush2.xpose.msra.mxu0 0.0
    %232 = vmatprep.subr.mxu0 0.0
    %233 = vmatpush2.xpose.msra.mxu0 0.0
    %234 = vmatprep.subr.mxu0 0.0
    %235 = vmatpush2.xpose.msra.mxu0 0.0
    %236 = vmatprep.mubr.f32.mxu0 0.0
    %237 = vmatmul.mubr.f32.gmra.mxu0 %v164
    %v238 = vpop.f32.mrf.mxu0
    %v239 = vadd.f32 %v30, %v238
    %v240 = vpop.f32.mrf.mxu0
    %241 = vmatprep.mubr.f32.mxu0 0.0
    %242 = vmatmul.mubr.f32.gmra.mxu0 %v166
    %v243 = vpop.f32.mrf.mxu0
    %v244 = vadd.f32 %v31, %v243
    %v245 = vpop.f32.mrf.mxu0
    %246 = vdwg.mxu0
    %vm247 = vcmask 130048
    %v248 = vsel %vm247, %v239, -inf
    %249 = vmax.xlane.f32.xlu0 %v248
    %v250 = vpop.xlane.xlu0 %249
    %v251 = vsel %vm247, %v244, -inf
    %252 = vmax.xlane.f32.xlu0 %v251
    %v253 = vpop.xlane.xlu0 %252
    %v254 = vsub.f32 %v239, %v250
    %v255 = vsub.f32 %v244, %v253
    %v256 = vmul.f32 %v254, 1.442695
    %v257 = vpow.pop %v256
    %v258 = vmul.f32 %v255, 1.442695
    %v259 = vpow.pop %v258
    %v260 = vsel %vm247, %v257, 0.0
    %261 = vadd.xlane.f32.xlu0 %v260
    %v262 = vpop.xlane.xlu0 %261
    %v263 = vsel %vm247, %v259, 0.0
    %264 = vadd.xlane.f32.xlu0 %v263
    %v265 = vpop.xlane.xlu0 %264
    %v266 = vrcp.pop %v262
    %v267 = vmul.f32 %v257, %v266
    %v268 = vrcp.pop %v265
    %v269 = vmul.f32 %v259, %v268
    %270 = vrot.lane.b32.xlu0 %v149, 64
    %v271 = vpop.permute.xlu0 %270
    %272 = vrot.lane.b32.xlu0 %v154, 64
    %v273 = vpop.permute.xlu0 %272
    %v277 = vsel %vm247, %v267, 0
    %v280 = vsel %vm247, %v269, 0
    %282 = vmatprep.subr.mxu0 0.0
    %283 = vmatpush1.msra.mxu0 0.0
    %284 = vmatprep.subr.mxu0 0.0
    %285 = vmatpush1.msra.mxu0 0.0
    %286 = vmatprep.subr.mxu0 0.0
    %287 = vmatpush1.msra.mxu0 0.0
    %288 = vmatprep.subr.mxu0 0.0
    %289 = vmatpush1.msra.mxu0 0.0
    %290 = vmatprep.subr.mxu0 0.0
    %291 = vmatpush1.msra.mxu0 0.0
    %292 = vmatprep.subr.mxu0 0.0
    %293 = vmatpush1.msra.mxu0 0.0
    %294 = vmatprep.subr.mxu0 0.0
    %295 = vmatpush1.msra.mxu0 0.0
    %296 = vmatprep.subr.mxu0 0.0
    %297 = vmatpush1.msra.mxu0 0.0
    %298 = vmatprep.subr.mxu0 0.0
    %299 = vmatpush1.msra.mxu0 0.0
    %300 = vmatprep.subr.mxu0 0.0
    %301 = vmatpush1.msra.mxu0 0.0
    %302 = vmatprep.subr.mxu0 0.0
    %303 = vmatpush1.msra.mxu0 0.0
    %304 = vmatprep.subr.mxu0 0.0
    %305 = vmatpush1.msra.mxu0 0.0
    %306 = vmatprep.subr.mxu0 0.0
    %307 = vmatpush1.msra.mxu0 0.0
    %308 = vmatprep.subr.mxu0 0.0
    %309 = vmatpush1.msra.mxu0 0.0
    %310 = vmatprep.subr.mxu0 0.0
    %311 = vmatpush1.msra.mxu0 %v273
    %312 = vmatprep.subr.mxu0 0.0
    %313 = vmatpush1.msra.mxu0 %v271
    %314 = vmatprep.subr.mxu0 0.0
    %315 = vmatpush2.msra.mxu0 0.0
    %316 = vmatprep.subr.mxu0 0.0
    %317 = vmatpush2.msra.mxu0 0.0
    %318 = vmatprep.subr.mxu0 0.0
    %319 = vmatpush2.msra.mxu0 0.0
    %320 = vmatprep.subr.mxu0 0.0
    %321 = vmatpush2.msra.mxu0 0.0
    %322 = vmatprep.subr.mxu0 0.0
    %323 = vmatpush2.msra.mxu0 0.0
    %324 = vmatprep.subr.mxu0 0.0
    %325 = vmatpush2.msra.mxu0 0.0
    %326 = vmatprep.subr.mxu0 0.0
    %327 = vmatpush2.msra.mxu0 0.0
    %328 = vmatprep.subr.mxu0 0.0
    %329 = vmatpush2.msra.mxu0 0.0
    %330 = vmatprep.subr.mxu0 0.0
    %331 = vmatpush2.msra.mxu0 0.0
    %332 = vmatprep.subr.mxu0 0.0
    %333 = vmatpush2.msra.mxu0 0.0
    %334 = vmatprep.subr.mxu0 0.0
    %335 = vmatpush2.msra.mxu0 0.0
    %336 = vmatprep.subr.mxu0 0.0
    %337 = vmatpush2.msra.mxu0 0.0
    %338 = vmatprep.subr.mxu0 0.0
    %339 = vmatpush2.msra.mxu0 0.0
    %340 = vmatprep.subr.mxu0 0.0
    %341 = vmatpush2.msra.mxu0 0.0
    %342 = vmatprep.subr.mxu0 0.0
    %343 = vmatpush2.msra.mxu0 0.0
    %344 = vmatprep.subr.mxu0 0.0
    %345 = vmatpush2.msra.mxu0 0.0
    %346 = vmatprep.mubr.f32.mxu0 0.0
    %347 = vmatmul.mubr.f32.gmra.mxu0 %v277
    %v348 = vpop.f32.mrf.mxu0
    %v349 = vadd.f32 0.0, %v348
    %v350 = vpop.f32.mrf.mxu0
    %351 = vmatprep.mubr.f32.mxu0 0.0
    %352 = vmatmul.mubr.f32.gmra.mxu0 %v280
    %v353 = vpop.f32.mrf.mxu0
    %v354 = vadd.f32 0.0, %v353
    %v355 = vpop.f32.mrf.mxu0
    %356 = vdwg.mxu0
    %357 = vrot.lane.b32.xlu0 %v149, 120
    %v358 = vpop.permute.xlu0 %357
    %359 = vrot.lane.b32.xlu0 %v154, 120
    %v360 = vpop.permute.xlu0 %359
    %361 = vrot.lane.b32.xlu0 %v149, 88
    %v362 = vpop.permute.xlu0 %361
    %363 = vrot.lane.b32.xlu0 %v154, 88
    %v364 = vpop.permute.xlu0 %363
    %v365 = vsel %vm163, %v358, 0
    %v367 = vsel %vm163, %v360, 0
    %v369 = vsel %vm163, %v362, 0
    %v371 = vsel %vm163, %v364, 0
    %373 = vmatprep.subr.mxu0 0.0
    %374 = vmatpush1.xpose.msra.mxu0 0.0
    %375 = vmatprep.subr.mxu0 0.0
    %376 = vmatpush1.xpose.msra.mxu0 0.0
    %377 = vmatprep.subr.mxu0 0.0
    %378 = vmatpush1.xpose.msra.mxu0 0.0
    %379 = vmatprep.subr.mxu0 0.0
    %380 = vmatpush1.xpose.msra.mxu0 0.0
    %381 = vmatprep.subr.mxu0 0.0
    %382 = vmatpush1.xpose.msra.mxu0 0.0
    %383 = vmatprep.subr.mxu0 0.0
    %384 = vmatpush1.xpose.msra.mxu0 0.0
    %385 = vmatprep.subr.mxu0 0.0
    %386 = vmatpush1.xpose.msra.mxu0 0.0
    %387 = vmatprep.subr.mxu0 0.0
    %388 = vmatpush1.xpose.msra.mxu0 0.0
    %389 = vmatprep.subr.mxu0 0.0
    %390 = vmatpush1.xpose.msra.mxu0 0.0
    %391 = vmatprep.subr.mxu0 0.0
    %392 = vmatpush1.xpose.msra.mxu0 0.0
    %393 = vmatprep.subr.mxu0 0.0
    %394 = vmatpush1.xpose.msra.mxu0 0.0
    %395 = vmatprep.subr.mxu0 0.0
    %396 = vmatpush1.xpose.msra.mxu0 0.0
    %397 = vmatprep.subr.mxu0 0.0
    %398 = vmatpush1.xpose.msra.mxu0 0.0
    %399 = vmatprep.subr.mxu0 0.0
    %400 = vmatpush1.xpose.msra.mxu0 0.0
    %401 = vmatprep.subr.mxu0 0.0
    %402 = vmatpush1.xpose.msra.mxu0 %v371
    %403 = vmatprep.subr.mxu0 0.0
    %404 = vmatpush1.xpose.msra.mxu0 %v369
    %405 = vmatprep.subr.mxu0 0.0
    %406 = vmatpush2.xpose.msra.mxu0 0.0
    %407 = vmatprep.subr.mxu0 0.0
    %408 = vmatpush2.xpose.msra.mxu0 0.0
    %409 = vmatprep.subr.mxu0 0.0
    %410 = vmatpush2.xpose.msra.mxu0 0.0
    %411 = vmatprep.subr.mxu0 0.0
    %412 = vmatpush2.xpose.msra.mxu0 0.0
    %413 = vmatprep.subr.mxu0 0.0
    %414 = vmatpush2.xpose.msra.mxu0 0.0
    %415 = vmatprep.subr.mxu0 0.0
    %416 = vmatpush2.xpose.msra.mxu0 0.0
    %417 = vmatprep.subr.mxu0 0.0
    %418 = vmatpush2.xpose.msra.mxu0 0.0
    %419 = vmatprep.subr.mxu0 0.0
    %420 = vmatpush2.xpose.msra.mxu0 0.0
    %421 = vmatprep.subr.mxu0 0.0
    %422 = vmatpush2.xpose.msra.mxu0 0.0
    %423 = vmatprep.subr.mxu0 0.0
    %424 = vmatpush2.xpose.msra.mxu0 0.0
    %425 = vmatprep.subr.mxu0 0.0
    %426 = vmatpush2.xpose.msra.mxu0 0.0
    %427 = vmatprep.subr.mxu0 0.0
    %428 = vmatpush2.xpose.msra.mxu0 0.0
    %429 = vmatprep.subr.mxu0 0.0
    %430 = vmatpush2.xpose.msra.mxu0 0.0
    %431 = vmatprep.subr.mxu0 0.0
    %432 = vmatpush2.xpose.msra.mxu0 0.0
    %433 = vmatprep.subr.mxu0 0.0
    %434 = vmatpush2.xpose.msra.mxu0 0.0
    %435 = vmatprep.subr.mxu0 0.0
    %436 = vmatpush2.xpose.msra.mxu0 0.0
    %437 = vmatprep.mubr.f32.mxu0 0.0
    %438 = vmatmul.mubr.f32.gmra.mxu0 %v365
    %v439 = vpop.f32.mrf.mxu0
    %v440 = vadd.f32 %v30, %v439
    %v441 = vpop.f32.mrf.mxu0
    %442 = vmatprep.mubr.f32.mxu0 0.0
    %443 = vmatmul.mubr.f32.gmra.mxu0 %v367
    %v444 = vpop.f32.mrf.mxu0
    %v445 = vadd.f32 %v31, %v444
    %v446 = vpop.f32.mrf.mxu0
    %447 = vdwg.mxu0
    %v448 = vsel %vm247, %v440, -inf
    %449 = vmax.xlane.f32.xlu0 %v448
    %v450 = vpop.xlane.xlu0 %449
    %v451 = vsel %vm247, %v445, -inf
    %452 = vmax.xlane.f32.xlu0 %v451
    %v453 = vpop.xlane.xlu0 %452
    %v454 = vsub.f32 %v440, %v450
    %v455 = vsub.f32 %v445, %v453
    %v456 = vmul.f32 %v454, 1.442695
    %v457 = vpow.pop %v456
    %v458 = vmul.f32 %v455, 1.442695
    %v459 = vpow.pop %v458
    %v460 = vsel %vm247, %v457, 0.0
    %461 = vadd.xlane.f32.xlu0 %v460
    %v462 = vpop.xlane.xlu0 %461
    %v463 = vsel %vm247, %v459, 0.0
    %464 = vadd.xlane.f32.xlu0 %v463
    %v465 = vpop.xlane.xlu0 %464
    %v466 = vrcp.pop %v462
    %v467 = vmul.f32 %v457, %v466
    %v468 = vrcp.pop %v465
    %v469 = vmul.f32 %v459, %v468
    %470 = vrot.lane.b32.xlu0 %v149, 56
    %v471 = vpop.permute.xlu0 %470
    %472 = vrot.lane.b32.xlu0 %v154, 56
    %v473 = vpop.permute.xlu0 %472
    %v477 = vsel %vm247, %v467, 0
    %v480 = vsel %vm247, %v469, 0
    %482 = vmatprep.subr.mxu0 0.0
    %483 = vmatpush1.msra.mxu0 0.0
    %484 = vmatprep.subr.mxu0 0.0
    %485 = vmatpush1.msra.mxu0 0.0
    %486 = vmatprep.subr.mxu0 0.0
    %487 = vmatpush1.msra.mxu0 0.0
    %488 = vmatprep.subr.mxu0 0.0
    %489 = vmatpush1.msra.mxu0 0.0
    %490 = vmatprep.subr.mxu0 0.0
    %491 = vmatpush1.msra.mxu0 0.0
    %492 = vmatprep.subr.mxu0 0.0
    %493 = vmatpush1.msra.mxu0 0.0
    %494 = vmatprep.subr.mxu0 0.0
    %495 = vmatpush1.msra.mxu0 0.0
    %496 = vmatprep.subr.mxu0 0.0
    %497 = vmatpush1.msra.mxu0 0.0
    %498 = vmatprep.subr.mxu0 0.0
    %499 = vmatpush1.msra.mxu0 0.0
    %500 = vmatprep.subr.mxu0 0.0
    %501 = vmatpush1.msra.mxu0 0.0
    %502 = vmatprep.subr.mxu0 0.0
    %503 = vmatpush1.msra.mxu0 0.0
    %504 = vmatprep.subr.mxu0 0.0
    %505 = vmatpush1.msra.mxu0 0.0
    %506 = vmatprep.subr.mxu0 0.0
    %507 = vmatpush1.msra.mxu0 0.0
    %508 = vmatprep.subr.mxu0 0.0
    %509 = vmatpush1.msra.mxu0 0.0
    %510 = vmatprep.subr.mxu0 0.0
    %511 = vmatpush1.msra.mxu0 %v473
    %512 = vmatprep.subr.mxu0 0.0
    %513 = vmatpush1.msra.mxu0 %v471
    %514 = vmatprep.subr.mxu0 0.0
    %515 = vmatpush2.msra.mxu0 0.0
    %516 = vmatprep.subr.mxu0 0.0
    %517 = vmatpush2.msra.mxu0 0.0
    %518 = vmatprep.subr.mxu0 0.0
    %519 = vmatpush2.msra.mxu0 0.0
    %520 = vmatprep.subr.mxu0 0.0
    %521 = vmatpush2.msra.mxu0 0.0
    %522 = vmatprep.subr.mxu0 0.0
    %523 = vmatpush2.msra.mxu0 0.0
    %524 = vmatprep.subr.mxu0 0.0
    %525 = vmatpush2.msra.mxu0 0.0
    %526 = vmatprep.subr.mxu0 0.0
    %527 = vmatpush2.msra.mxu0 0.0
    %528 = vmatprep.subr.mxu0 0.0
    %529 = vmatpush2.msra.mxu0 0.0
    %530 = vmatprep.subr.mxu0 0.0
    %531 = vmatpush2.msra.mxu0 0.0
    %532 = vmatprep.subr.mxu0 0.0
    %533 = vmatpush2.msra.mxu0 0.0
    %534 = vmatprep.subr.mxu0 0.0
    %535 = vmatpush2.msra.mxu0 0.0
    %536 = vmatprep.subr.mxu0 0.0
    %537 = vmatpush2.msra.mxu0 0.0
    %538 = vmatprep.subr.mxu0 0.0
    %539 = vmatpush2.msra.mxu0 0.0
    %540 = vmatprep.subr.mxu0 0.0
    %541 = vmatpush2.msra.mxu0 0.0
    %542 = vmatprep.subr.mxu0 0.0
    %543 = vmatpush2.msra.mxu0 0.0
    %544 = vmatprep.subr.mxu0 0.0
    %545 = vmatpush2.msra.mxu0 0.0
    %546 = vmatprep.mubr.f32.mxu0 0.0
    %547 = vmatmul.mubr.f32.gmra.mxu0 %v477
    %v548 = vpop.f32.mrf.mxu0
    %v549 = vadd.f32 0.0, %v548
    %v550 = vpop.f32.mrf.mxu0
    %551 = vmatprep.mubr.f32.mxu0 0.0
    %552 = vmatmul.mubr.f32.gmra.mxu0 %v480
    %v553 = vpop.f32.mrf.mxu0
    %v554 = vadd.f32 0.0, %v553
    %v555 = vpop.f32.mrf.mxu0
    %556 = vdwg.mxu0
    %557 = vrot.lane.b32.xlu0 %v149, 112
    %v558 = vpop.permute.xlu0 %557
    %559 = vrot.lane.b32.xlu0 %v154, 112
    %v560 = vpop.permute.xlu0 %559
    %561 = vrot.lane.b32.xlu0 %v149, 80
    %v562 = vpop.permute.xlu0 %561
    %563 = vrot.lane.b32.xlu0 %v154, 80
    %v564 = vpop.permute.xlu0 %563
    %v565 = vsel %vm163, %v558, 0
    %v567 = vsel %vm163, %v560, 0
    %v569 = vsel %vm163, %v562, 0
    %v571 = vsel %vm163, %v564, 0
    %573 = vmatprep.subr.mxu0 0.0
    %574 = vmatpush1.xpose.msra.mxu0 0.0
    %575 = vmatprep.subr.mxu0 0.0
    %576 = vmatpush1.xpose.msra.mxu0 0.0
    %577 = vmatprep.subr.mxu0 0.0
    %578 = vmatpush1.xpose.msra.mxu0 0.0
    %579 = vmatprep.subr.mxu0 0.0
    %580 = vmatpush1.xpose.msra.mxu0 0.0
    %581 = vmatprep.subr.mxu0 0.0
    %582 = vmatpush1.xpose.msra.mxu0 0.0
    %583 = vmatprep.subr.mxu0 0.0
    %584 = vmatpush1.xpose.msra.mxu0 0.0
    %585 = vmatprep.subr.mxu0 0.0
    %586 = vmatpush1.xpose.msra.mxu0 0.0
    %587 = vmatprep.subr.mxu0 0.0
    %588 = vmatpush1.xpose.msra.mxu0 0.0
    %589 = vmatprep.subr.mxu0 0.0
    %590 = vmatpush1.xpose.msra.mxu0 0.0
    %591 = vmatprep.subr.mxu0 0.0
    %592 = vmatpush1.xpose.msra.mxu0 0.0
    %593 = vmatprep.subr.mxu0 0.0
    %594 = vmatpush1.xpose.msra.mxu0 0.0
    %595 = vmatprep.subr.mxu0 0.0
    %596 = vmatpush1.xpose.msra.mxu0 0.0
    %597 = vmatprep.subr.mxu0 0.0
    %598 = vmatpush1.xpose.msra.mxu0 0.0
    %599 = vmatprep.subr.mxu0 0.0
    %600 = vmatpush1.xpose.msra.mxu0 0.0
    %601 = vmatprep.subr.mxu0 0.0
    %602 = vmatpush1.xpose.msra.mxu0 %v571
    %603 = vmatprep.subr.mxu0 0.0
    %604 = vmatpush1.xpose.msra.mxu0 %v569
    %605 = vmatprep.subr.mxu0 0.0
    %606 = vmatpush2.xpose.msra.mxu0 0.0
    %607 = vmatprep.subr.mxu0 0.0
    %608 = vmatpush2.xpose.msra.mxu0 0.0
    %609 = vmatprep.subr.mxu0 0.0
    %610 = vmatpush2.xpose.msra.mxu0 0.0
    %611 = vmatprep.subr.mxu0 0.0
    %612 = vmatpush2.xpose.msra.mxu0 0.0
    %613 = vmatprep.subr.mxu0 0.0
    %614 = vmatpush2.xpose.msra.mxu0 0.0
    %615 = vmatprep.subr.mxu0 0.0
    %616 = vmatpush2.xpose.msra.mxu0 0.0
    %617 = vmatprep.subr.mxu0 0.0
    %618 = vmatpush2.xpose.msra.mxu0 0.0
    %619 = vmatprep.subr.mxu0 0.0
    %620 = vmatpush2.xpose.msra.mxu0 0.0
    %621 = vmatprep.subr.mxu0 0.0
    %622 = vmatpush2.xpose.msra.mxu0 0.0
    %623 = vmatprep.subr.mxu0 0.0
    %624 = vmatpush2.xpose.msra.mxu0 0.0
    %625 = vmatprep.subr.mxu0 0.0
    %626 = vmatpush2.xpose.msra.mxu0 0.0
    %627 = vmatprep.subr.mxu0 0.0
    %628 = vmatpush2.xpose.msra.mxu0 0.0
    %629 = vmatprep.subr.mxu0 0.0
    %630 = vmatpush2.xpose.msra.mxu0 0.0
    %631 = vmatprep.subr.mxu0 0.0
    %632 = vmatpush2.xpose.msra.mxu0 0.0
    %633 = vmatprep.subr.mxu0 0.0
    %634 = vmatpush2.xpose.msra.mxu0 0.0
    %635 = vmatprep.subr.mxu0 0.0
    %636 = vmatpush2.xpose.msra.mxu0 0.0
    %637 = vmatprep.mubr.f32.mxu0 0.0
    %638 = vmatmul.mubr.f32.gmra.mxu0 %v565
    %v639 = vpop.f32.mrf.mxu0
    %v640 = vadd.f32 %v30, %v639
    %v641 = vpop.f32.mrf.mxu0
    %642 = vmatprep.mubr.f32.mxu0 0.0
    %643 = vmatmul.mubr.f32.gmra.mxu0 %v567
    %v644 = vpop.f32.mrf.mxu0
    %v645 = vadd.f32 %v31, %v644
    %v646 = vpop.f32.mrf.mxu0
    %647 = vdwg.mxu0
    %v648 = vsel %vm247, %v640, -inf
    %649 = vmax.xlane.f32.xlu0 %v648
    %v650 = vpop.xlane.xlu0 %649
    %v651 = vsel %vm247, %v645, -inf
    %652 = vmax.xlane.f32.xlu0 %v651
    %v653 = vpop.xlane.xlu0 %652
    %v654 = vsub.f32 %v640, %v650
    %v655 = vsub.f32 %v645, %v653
    %v656 = vmul.f32 %v654, 1.442695
    %v657 = vpow.pop %v656
    %v658 = vmul.f32 %v655, 1.442695
    %v659 = vpow.pop %v658
    %v660 = vsel %vm247, %v657, 0.0
    %661 = vadd.xlane.f32.xlu0 %v660
    %v662 = vpop.xlane.xlu0 %661
    %v663 = vsel %vm247, %v659, 0.0
    %664 = vadd.xlane.f32.xlu0 %v663
    %v665 = vpop.xlane.xlu0 %664
    %v666 = vrcp.pop %v662
    %v667 = vmul.f32 %v657, %v666
    %v668 = vrcp.pop %v665
    %v669 = vmul.f32 %v659, %v668
    %670 = vrot.lane.b32.xlu0 %v149, 48
    %v671 = vpop.permute.xlu0 %670
    %672 = vrot.lane.b32.xlu0 %v154, 48
    %v673 = vpop.permute.xlu0 %672
    %v677 = vsel %vm247, %v667, 0
    %v680 = vsel %vm247, %v669, 0
    %682 = vmatprep.subr.mxu0 0.0
    %683 = vmatpush1.msra.mxu0 0.0
    %684 = vmatprep.subr.mxu0 0.0
    %685 = vmatpush1.msra.mxu0 0.0
    %686 = vmatprep.subr.mxu0 0.0
    %687 = vmatpush1.msra.mxu0 0.0
    %688 = vmatprep.subr.mxu0 0.0
    %689 = vmatpush1.msra.mxu0 0.0
    %690 = vmatprep.subr.mxu0 0.0
    %691 = vmatpush1.msra.mxu0 0.0
    %692 = vmatprep.subr.mxu0 0.0
    %693 = vmatpush1.msra.mxu0 0.0
    %694 = vmatprep.subr.mxu0 0.0
    %695 = vmatpush1.msra.mxu0 0.0
    %696 = vmatprep.subr.mxu0 0.0
    %697 = vmatpush1.msra.mxu0 0.0
    %698 = vmatprep.subr.mxu0 0.0
    %699 = vmatpush1.msra.mxu0 0.0
    %700 = vmatprep.subr.mxu0 0.0
    %701 = vmatpush1.msra.mxu0 0.0
    %702 = vmatprep.subr.mxu0 0.0
    %703 = vmatpush1.msra.mxu0 0.0
    %704 = vmatprep.subr.mxu0 0.0
    %705 = vmatpush1.msra.mxu0 0.0
    %706 = vmatprep.subr.mxu0 0.0
    %707 = vmatpush1.msra.mxu0 0.0
    %708 = vmatprep.subr.mxu0 0.0
    %709 = vmatpush1.msra.mxu0 0.0
    %710 = vmatprep.subr.mxu0 0.0
    %711 = vmatpush1.msra.mxu0 %v673
    %712 = vmatprep.subr.mxu0 0.0
    %713 = vmatpush1.msra.mxu0 %v671
    %714 = vmatprep.subr.mxu0 0.0
    %715 = vmatpush2.msra.mxu0 0.0
    %716 = vmatprep.subr.mxu0 0.0
    %717 = vmatpush2.msra.mxu0 0.0
    %718 = vmatprep.subr.mxu0 0.0
    %719 = vmatpush2.msra.mxu0 0.0
    %720 = vmatprep.subr.mxu0 0.0
    %721 = vmatpush2.msra.mxu0 0.0
    %722 = vmatprep.subr.mxu0 0.0
    %723 = vmatpush2.msra.mxu0 0.0
    %724 = vmatprep.subr.mxu0 0.0
    %725 = vmatpush2.msra.mxu0 0.0
    %726 = vmatprep.subr.mxu0 0.0
    %727 = vmatpush2.msra.mxu0 0.0
    %728 = vmatprep.subr.mxu0 0.0
    %729 = vmatpush2.msra.mxu0 0.0
    %730 = vmatprep.subr.mxu0 0.0
    %731 = vmatpush2.msra.mxu0 0.0
    %732 = vmatprep.subr.mxu0 0.0
    %733 = vmatpush2.msra.mxu0 0.0
    %734 = vmatprep.subr.mxu0 0.0
    %735 = vmatpush2.msra.mxu0 0.0
    %736 = vmatprep.subr.mxu0 0.0
    %737 = vmatpush2.msra.mxu0 0.0
    %738 = vmatprep.subr.mxu0 0.0
    %739 = vmatpush2.msra.mxu0 0.0
    %740 = vmatprep.subr.mxu0 0.0
    %741 = vmatpush2.msra.mxu0 0.0
    %742 = vmatprep.subr.mxu0 0.0
    %743 = vmatpush2.msra.mxu0 0.0
    %744 = vmatprep.subr.mxu0 0.0
    %745 = vmatpush2.msra.mxu0 0.0
    %746 = vmatprep.mubr.f32.mxu0 0.0
    %747 = vmatmul.mubr.f32.gmra.mxu0 %v677
    %v748 = vpop.f32.mrf.mxu0
    %v749 = vadd.f32 0.0, %v748
    %v750 = vpop.f32.mrf.mxu0
    %751 = vmatprep.mubr.f32.mxu0 0.0
    %752 = vmatmul.mubr.f32.gmra.mxu0 %v680
    %v753 = vpop.f32.mrf.mxu0
    %v754 = vadd.f32 0.0, %v753
    %v755 = vpop.f32.mrf.mxu0
    %756 = vdwg.mxu0
    %757 = vrot.lane.b32.xlu0 %v149, 104
    %v758 = vpop.permute.xlu0 %757
    %759 = vrot.lane.b32.xlu0 %v154, 104
    %v760 = vpop.permute.xlu0 %759
    %761 = vrot.lane.b32.xlu0 %v149, 72
    %v762 = vpop.permute.xlu0 %761
    %763 = vrot.lane.b32.xlu0 %v154, 72
    %v764 = vpop.permute.xlu0 %763
    %v765 = vsel %vm163, %v758, 0
    %v767 = vsel %vm163, %v760, 0
    %v769 = vsel %vm163, %v762, 0
    %v771 = vsel %vm163, %v764, 0
    %773 = vmatprep.subr.mxu0 0.0
    %774 = vmatpush1.xpose.msra.mxu0 0.0
    %775 = vmatprep.subr.mxu0 0.0
    %776 = vmatpush1.xpose.msra.mxu0 0.0
    %777 = vmatprep.subr.mxu0 0.0
    %778 = vmatpush1.xpose.msra.mxu0 0.0
    %779 = vmatprep.subr.mxu0 0.0
    %780 = vmatpush1.xpose.msra.mxu0 0.0
    %781 = vmatprep.subr.mxu0 0.0
    %782 = vmatpush1.xpose.msra.mxu0 0.0
    %783 = vmatprep.subr.mxu0 0.0
    %784 = vmatpush1.xpose.msra.mxu0 0.0
    %785 = vmatprep.subr.mxu0 0.0
    %786 = vmatpush1.xpose.msra.mxu0 0.0
    %787 = vmatprep.subr.mxu0 0.0
    %788 = vmatpush1.xpose.msra.mxu0 0.0
    %789 = vmatprep.subr.mxu0 0.0
    %790 = vmatpush1.xpose.msra.mxu0 0.0
    %791 = vmatprep.subr.mxu0 0.0
    %792 = vmatpush1.xpose.msra.mxu0 0.0
    %793 = vmatprep.subr.mxu0 0.0
    %794 = vmatpush1.xpose.msra.mxu0 0.0
    %795 = vmatprep.subr.mxu0 0.0
    %796 = vmatpush1.xpose.msra.mxu0 0.0
    %797 = vmatprep.subr.mxu0 0.0
    %798 = vmatpush1.xpose.msra.mxu0 0.0
    %799 = vmatprep.subr.mxu0 0.0
    %800 = vmatpush1.xpose.msra.mxu0 0.0
    %801 = vmatprep.subr.mxu0 0.0
    %802 = vmatpush1.xpose.msra.mxu0 %v771
    %803 = vmatprep.subr.mxu0 0.0
    %804 = vmatpush1.xpose.msra.mxu0 %v769
    %805 = vmatprep.subr.mxu0 0.0
    %806 = vmatpush2.xpose.msra.mxu0 0.0
    %807 = vmatprep.subr.mxu0 0.0
    %808 = vmatpush2.xpose.msra.mxu0 0.0
    %809 = vmatprep.subr.mxu0 0.0
    %810 = vmatpush2.xpose.msra.mxu0 0.0
    %811 = vmatprep.subr.mxu0 0.0
    %812 = vmatpush2.xpose.msra.mxu0 0.0
    %813 = vmatprep.subr.mxu0 0.0
    %814 = vmatpush2.xpose.msra.mxu0 0.0
    %815 = vmatprep.subr.mxu0 0.0
    %816 = vmatpush2.xpose.msra.mxu0 0.0
    %817 = vmatprep.subr.mxu0 0.0
    %818 = vmatpush2.xpose.msra.mxu0 0.0
    %819 = vmatprep.subr.mxu0 0.0
    %820 = vmatpush2.xpose.msra.mxu0 0.0
    %821 = vmatprep.subr.mxu0 0.0
    %822 = vmatpush2.xpose.msra.mxu0 0.0
    %823 = vmatprep.subr.mxu0 0.0
    %824 = vmatpush2.xpose.msra.mxu0 0.0
    %825 = vmatprep.subr.mxu0 0.0
    %826 = vmatpush2.xpose.msra.mxu0 0.0
    %827 = vmatprep.subr.mxu0 0.0
    %828 = vmatpush2.xpose.msra.mxu0 0.0
    %829 = vmatprep.subr.mxu0 0.0
    %830 = vmatpush2.xpose.msra.mxu0 0.0
    %831 = vmatprep.subr.mxu0 0.0
    %832 = vmatpush2.xpose.msra.mxu0 0.0
    %833 = vmatprep.subr.mxu0 0.0
    %834 = vmatpush2.xpose.msra.mxu0 0.0
    %835 = vmatprep.subr.mxu0 0.0
    %836 = vmatpush2.xpose.msra.mxu0 0.0
    %837 = vmatprep.mubr.f32.mxu0 0.0
    %838 = vmatmul.mubr.f32.gmra.mxu0 %v765
    %v839 = vpop.f32.mrf.mxu0
    %v840 = vadd.f32 %v30, %v839
    %v841 = vpop.f32.mrf.mxu0
    %842 = vmatprep.mubr.f32.mxu0 0.0
    %843 = vmatmul.mubr.f32.gmra.mxu0 %v767
    %v844 = vpop.f32.mrf.mxu0
    %v845 = vadd.f32 %v31, %v844
    %v846 = vpop.f32.mrf.mxu0
    %847 = vdwg.mxu0
    %v848 = vsel %vm247, %v840, -inf
    %849 = vmax.xlane.f32.xlu0 %v848
    %v850 = vpop.xlane.xlu0 %849
    %v851 = vsel %vm247, %v845, -inf
    %852 = vmax.xlane.f32.xlu0 %v851
    %v853 = vpop.xlane.xlu0 %852
    %v854 = vsub.f32 %v840, %v850
    %v855 = vsub.f32 %v845, %v853
    %v856 = vmul.f32 %v854, 1.442695
    %v857 = vpow.pop %v856
    %v858 = vmul.f32 %v855, 1.442695
    %v859 = vpow.pop %v858
    %v860 = vsel %vm247, %v857, 0.0
    %861 = vadd.xlane.f32.xlu0 %v860
    %v862 = vpop.xlane.xlu0 %861
    %v863 = vsel %vm247, %v859, 0.0
    %864 = vadd.xlane.f32.xlu0 %v863
    %v865 = vpop.xlane.xlu0 %864
    %v866 = vrcp.pop %v862
    %v867 = vmul.f32 %v857, %v866
    %v868 = vrcp.pop %v865
    %v869 = vmul.f32 %v859, %v868
    %870 = vrot.lane.b32.xlu0 %v149, 40
    %v871 = vpop.permute.xlu0 %870
    %872 = vrot.lane.b32.xlu0 %v154, 40
    %v873 = vpop.permute.xlu0 %872
    %v877 = vsel %vm247, %v867, 0
    %v880 = vsel %vm247, %v869, 0
    %882 = vmatprep.subr.mxu0 0.0
    %883 = vmatpush1.msra.mxu0 0.0
    %884 = vmatprep.subr.mxu0 0.0
    %885 = vmatpush1.msra.mxu0 0.0
    %886 = vmatprep.subr.mxu0 0.0
    %887 = vmatpush1.msra.mxu0 0.0
    %888 = vmatprep.subr.mxu0 0.0
    %889 = vmatpush1.msra.mxu0 0.0
    %890 = vmatprep.subr.mxu0 0.0
    %891 = vmatpush1.msra.mxu0 0.0
    %892 = vmatprep.subr.mxu0 0.0
    %893 = vmatpush1.msra.mxu0 0.0
    %894 = vmatprep.subr.mxu0 0.0
    %895 = vmatpush1.msra.mxu0 0.0
    %896 = vmatprep.subr.mxu0 0.0
    %897 = vmatpush1.msra.mxu0 0.0
    %898 = vmatprep.subr.mxu0 0.0
    %899 = vmatpush1.msra.mxu0 0.0
    %900 = vmatprep.subr.mxu0 0.0
    %901 = vmatpush1.msra.mxu0 0.0
    %902 = vmatprep.subr.mxu0 0.0
    %903 = vmatpush1.msra.mxu0 0.0
    %904 = vmatprep.subr.mxu0 0.0
    %905 = vmatpush1.msra.mxu0 0.0
    %906 = vmatprep.subr.mxu0 0.0
    %907 = vmatpush1.msra.mxu0 0.0
    %908 = vmatprep.subr.mxu0 0.0
    %909 = vmatpush1.msra.mxu0 0.0
    %910 = vmatprep.subr.mxu0 0.0
    %911 = vmatpush1.msra.mxu0 %v873
    %912 = vmatprep.subr.mxu0 0.0
    %913 = vmatpush1.msra.mxu0 %v871
    %914 = vmatprep.subr.mxu0 0.0
    %915 = vmatpush2.msra.mxu0 0.0
    %916 = vmatprep.subr.mxu0 0.0
    %917 = vmatpush2.msra.mxu0 0.0
    %918 = vmatprep.subr.mxu0 0.0
    %919 = vmatpush2.msra.mxu0 0.0
    %920 = vmatprep.subr.mxu0 0.0
    %921 = vmatpush2.msra.mxu0 0.0
    %922 = vmatprep.subr.mxu0 0.0
    %923 = vmatpush2.msra.mxu0 0.0
    %924 = vmatprep.subr.mxu0 0.0
    %925 = vmatpush2.msra.mxu0 0.0
    %926 = vmatprep.subr.mxu0 0.0
    %927 = vmatpush2.msra.mxu0 0.0
    %928 = vmatprep.subr.mxu0 0.0
    %929 = vmatpush2.msra.mxu0 0.0
    %930 = vmatprep.subr.mxu0 0.0
    %931 = vmatpush2.msra.mxu0 0.0
    %932 = vmatprep.subr.mxu0 0.0
    %933 = vmatpush2.msra.mxu0 0.0
    %934 = vmatprep.subr.mxu0 0.0
    %935 = vmatpush2.msra.mxu0 0.0
    %936 = vmatprep.subr.mxu0 0.0
    %937 = vmatpush2.msra.mxu0 0.0
    %938 = vmatprep.subr.mxu0 0.0
    %939 = vmatpush2.msra.mxu0 0.0
    %940 = vmatprep.subr.mxu0 0.0
    %941 = vmatpush2.msra.mxu0 0.0
    %942 = vmatprep.subr.mxu0 0.0
    %943 = vmatpush2.msra.mxu0 0.0
    %944 = vmatprep.subr.mxu0 0.0
    %945 = vmatpush2.msra.mxu0 0.0
    %946 = vmatprep.mubr.f32.mxu0 0.0
    %947 = vmatmul.mubr.f32.gmra.mxu0 %v877
    %v948 = vpop.f32.mrf.mxu0
    %v949 = vadd.f32 0.0, %v948
    %v950 = vpop.f32.mrf.mxu0
    %951 = vmatprep.mubr.f32.mxu0 0.0
    %952 = vmatmul.mubr.f32.gmra.mxu0 %v880
    %v953 = vpop.f32.mrf.mxu0
    %v954 = vadd.f32 0.0, %v953
    %v955 = vpop.f32.mrf.mxu0
    %956 = vdwg.mxu0
    %959 = vrot.lane.b32.xlu0 %v549, 8
    %v960 = vpop.permute.xlu0 %959
    %961 = vrot.lane.b32.xlu0 %v554, 8
    %v962 = vpop.permute.xlu0 %961
    %967 = vrot.lane.b32.xlu0 %v749, 16
    %v968 = vpop.permute.xlu0 %967
    %969 = vrot.lane.b32.xlu0 %v754, 16
    %v970 = vpop.permute.xlu0 %969
    %975 = vrot.lane.b32.xlu0 %v949, 24
    %v976 = vpop.permute.xlu0 %975
    %977 = vrot.lane.b32.xlu0 %v954, 24
    %v978 = vpop.permute.xlu0 %977
    %v981 = vsel %vm163, %v349, %v960
    %v982 = vsel %vm163, %v354, %v962
    %v983 = vsel %vm247, %v981, %v968
    %v984 = vsel %vm247, %v982, %v970
    %vm985 = vcmask 195584
    %v986 = vsel %vm985, %v983, %v976
    %v987 = vsel %vm985, %v984, %v978
    %v988 = vld [vmem:[%s2] sm:$0xff]
    %v989 = vld [vmem:[%s2 + $0x8] sm:$0xff]
    %v990 = vld [vmem:[%s2 + $0x10] sm:$0xff]
    %v991 = vld [vmem:[%s2 + $0x18] sm:$0xff]
    %v992 = vlaneseq
    %v993 = vshrl.u32 %v992, 7
    %v994 = vsub.s32 0, %v993
    %v995 = vrot.slane %v25, %v994
    %v997 = vsel %vm32, %v986, 0
    %v1000 = vsel %vm32, %v987, 0
    %1002 = vmatprep.subr.mxu0 0.0
    %1003 = vmatpush1.msra.mxu0 0.0
    %1004 = vmatprep.subr.mxu0 0.0
    %1005 = vmatpush1.msra.mxu0 0.0
    %1006 = vmatprep.subr.mxu0 0.0
    %1007 = vmatpush1.msra.mxu0 0.0
    %1008 = vmatprep.subr.mxu0 0.0
    %1009 = vmatpush1.msra.mxu0 0.0
    %1010 = vmatprep.subr.mxu0 0.0
    %1011 = vmatpush1.msra.mxu0 0.0
    %1012 = vmatprep.subr.mxu0 0.0
    %1013 = vmatpush1.msra.mxu0 0.0
    %1014 = vmatprep.subr.mxu0 0.0
    %1015 = vmatpush1.msra.mxu0 0.0
    %1016 = vmatprep.subr.mxu0 0.0
    %1017 = vmatpush1.msra.mxu0 0.0
    %1018 = vmatprep.subr.mxu0 0.0
    %1019 = vmatpush1.msra.mxu0 0.0
    %1020 = vmatprep.subr.mxu0 0.0
    %1021 = vmatpush1.msra.mxu0 0.0
    %1022 = vmatprep.subr.mxu0 0.0
    %1023 = vmatpush1.msra.mxu0 0.0
    %1024 = vmatprep.subr.mxu0 0.0
    %1025 = vmatpush1.msra.mxu0 0.0
    %1026 = vmatprep.subr.mxu0 0.0
    %1027 = vmatpush1.msra.mxu0 %v991
    %1028 = vmatprep.subr.mxu0 0.0
    %1029 = vmatpush1.msra.mxu0 %v990
    %1030 = vmatprep.subr.mxu0 0.0
    %1031 = vmatpush1.msra.mxu0 %v989
    %1032 = vmatprep.subr.mxu0 0.0
    %1033 = vmatpush1.msra.mxu0 %v988
    %1034 = vmatprep.subr.mxu0 0.0
    %1035 = vmatpush2.msra.mxu0 0.0
    %1036 = vmatprep.subr.mxu0 0.0
    %1037 = vmatpush2.msra.mxu0 0.0
    %1038 = vmatprep.subr.mxu0 0.0
    %1039 = vmatpush2.msra.mxu0 0.0
    %1040 = vmatprep.subr.mxu0 0.0
    %1041 = vmatpush2.msra.mxu0 0.0
    %1042 = vmatprep.subr.mxu0 0.0
    %1043 = vmatpush2.msra.mxu0 0.0
    %1044 = vmatprep.subr.mxu0 0.0
    %1045 = vmatpush2.msra.mxu0 0.0
    %1046 = vmatprep.subr.mxu0 0.0
    %1047 = vmatpush2.msra.mxu0 0.0
    %1048 = vmatprep.subr.mxu0 0.0
    %1049 = vmatpush2.msra.mxu0 0.0
    %1050 = vmatprep.subr.mxu0 0.0
    %1051 = vmatpush2.msra.mxu0 0.0
    %1052 = vmatprep.subr.mxu0 0.0
    %1053 = vmatpush2.msra.mxu0 0.0
    %1054 = vmatprep.subr.mxu0 0.0
    %1055 = vmatpush2.msra.mxu0 0.0
    %1056 = vmatprep.subr.mxu0 0.0
    %1057 = vmatpush2.msra.mxu0 0.0
    %1058 = vmatprep.subr.mxu0 0.0
    %1059 = vmatpush2.msra.mxu0 0.0
    %1060 = vmatprep.subr.mxu0 0.0
    %1061 = vmatpush2.msra.mxu0 0.0
    %1062 = vmatprep.subr.mxu0 0.0
    %1063 = vmatpush2.msra.mxu0 0.0
    %1064 = vmatprep.subr.mxu0 0.0
    %1065 = vmatpush2.msra.mxu0 0.0
    %1066 = vmatprep.mubr.f32.mxu0 0.0
    %1067 = vmatmul.mubr.f32.gmra.mxu0 %v997
    %v1068 = vpop.f32.mrf.mxu0
    %v1069 = vadd.f32 %v995, %v1068
    %v1070 = vpop.f32.mrf.mxu0
    %1071 = vmatprep.mubr.f32.mxu0 0.0
    %1072 = vmatmul.mubr.f32.gmra.mxu0 %v1000
    %v1073 = vpop.f32.mrf.mxu0
    %v1074 = vadd.f32 %v995, %v1073
    %v1075 = vpop.f32.mrf.mxu0
    %1076 = vdwg.mxu0
    %v1077 = vadd.f32 %v21, %v1069
    %v1078 = vadd.f32 %v22, %v1074
    %v1079 = vsel %vm32, %v1077, 0.0
    %1080 = vadd.xlane.f32.xlu0 %v1079
    %v1081 = vpop.xlane.xlu0 %1080
    %v1082 = vsel %vm32, %v1078, 0.0
    %1083 = vadd.xlane.f32.xlu0 %v1082
    %v1084 = vpop.xlane.xlu0 %1083
    %v1085 = vmul.f32 %v1081, %v39
    %v1086 = vmul.f32 %v1084, %v39
    %v1087 = vsub.f32 %v1077, %v1085
    %v1088 = vsub.f32 %v1078, %v1086
    %v1089 = vmul.f32 %v1087, %v1087
    %v1090 = vmul.f32 %v1088, %v1088
    %v1091 = vsel %vm32, %v1089, 0.0
    %1092 = vadd.xlane.f32.xlu0 %v1091
    %v1093 = vpop.xlane.xlu0 %1092
    %v1094 = vsel %vm32, %v1090, 0.0
    %1095 = vadd.xlane.f32.xlu0 %v1094
    %v1096 = vpop.xlane.xlu0 %1095
    %v1097 = vmul.f32 %v1093, %v39
    %v1098 = vmul.f32 %v1096, %v39
    %v1099 = vadd.f32 %v1097, 1e-05
    %v1100 = vadd.f32 %v1098, 1e-05
    %v1101 = vrsqrt.pop %v1099
    %v1102 = vrsqrt.pop %v1100
    %v1103 = vmul.f32 %v1087, %v1101
    %v1104 = vmul.f32 %v1088, %v1102
    %v1105 = vlaneseq
    %v1106 = vshrl.u32 %v1105, 7
    %v1107 = vsub.s32 0, %v1106
    %v1108 = vrot.slane %v26, %v1107
    %v1109 = vmul.f32 %v1103, %v1108
    %v1110 = vmul.f32 %v1104, %v1108
    %v1111 = vlaneseq
    %v1112 = vshrl.u32 %v1111, 7
    %v1113 = vsub.s32 0, %v1112
    %v1114 = vrot.slane %v27, %v1113
    %v1115 = vadd.f32 %v1109, %v1114
    %v1116 = vadd.f32 %v1110, %v1114
    %v1117 = vld [vmem:[%s1 + $0x20] sm:$0xff]
    %v1118 = vld [vmem:[%s1 + $0x28] sm:$0xff]
    %v1119 = vld [vmem:[%s1 + $0x30] sm:$0xff]
    %v1120 = vld [vmem:[%s1 + $0x38] sm:$0xff]
    %v1121 = vlaneseq
    %v1122 = vshrl.u32 %v1121, 7
    %v1123 = vsub.s32 0, %v1122
    %v1124 = vrot.slane %v29, %v1123
    %v1126 = vsel %vm32, %v1115, 0
    %v1129 = vsel %vm32, %v1116, 0
    %1131 = vmatprep.subr.mxu0 0.0
    %1132 = vmatpush1.msra.mxu0 0.0
    %1133 = vmatprep.subr.mxu0 0.0
    %1134 = vmatpush1.msra.mxu0 0.0
    %1135 = vmatprep.subr.mxu0 0.0
    %1136 = vmatpush1.msra.mxu0 0.0
    %1137 = vmatprep.subr.mxu0 0.0
    %1138 = vmatpush1.msra.mxu0 0.0
    %1139 = vmatprep.subr.mxu0 0.0
    %1140 = vmatpush1.msra.mxu0 0.0
    %1141 = vmatprep.subr.mxu0 0.0
    %1142 = vmatpush1.msra.mxu0 0.0
    %1143 = vmatprep.subr.mxu0 0.0
    %1144 = vmatpush1.msra.mxu0 0.0
    %1145 = vmatprep.subr.mxu0 0.0
    %1146 = vmatpush1.msra.mxu0 0.0
    %1147 = vmatprep.subr.mxu0 0.0
    %1148 = vmatpush1.msra.mxu0 0.0
    %1149 = vmatprep.subr.mxu0 0.0
    %1150 = vmatpush1.msra.mxu0 0.0
    %1151 = vmatprep.subr.mxu0 0.0
    %1152 = vmatpush1.msra.mxu0 0.0
    %1153 = vmatprep.subr.mxu0 0.0
    %1154 = vmatpush1.msra.mxu0 0.0
    %1155 = vmatprep.subr.mxu0 0.0
    %1156 = vmatpush1.msra.mxu0 %v1120
    %1157 = vmatprep.subr.mxu0 0.0
    %1158 = vmatpush1.msra.mxu0 %v1119
    %1159 = vmatprep.subr.mxu0 0.0
    %1160 = vmatpush1.msra.mxu0 %v1118
    %1161 = vmatprep.subr.mxu0 0.0
    %1162 = vmatpush1.msra.mxu0 %v1117
    %1163 = vmatprep.subr.mxu0 0.0
    %1164 = vmatpush2.msra.mxu0 0.0
    %1165 = vmatprep.subr.mxu0 0.0
    %1166 = vmatpush2.msra.mxu0 0.0
    %1167 = vmatprep.subr.mxu0 0.0
    %1168 = vmatpush2.msra.mxu0 0.0
    %1169 = vmatprep.subr.mxu0 0.0
    %1170 = vmatpush2.msra.mxu0 0.0
    %1171 = vmatprep.subr.mxu0 0.0
    %1172 = vmatpush2.msra.mxu0 0.0
    %1173 = vmatprep.subr.mxu0 0.0
    %1174 = vmatpush2.msra.mxu0 0.0
    %1175 = vmatprep.subr.mxu0 0.0
    %1176 = vmatpush2.msra.mxu0 0.0
    %1177 = vmatprep.subr.mxu0 0.0
    %1178 = vmatpush2.msra.mxu0 0.0
    %1179 = vmatprep.subr.mxu0 0.0
    %1180 = vmatpush2.msra.mxu0 0.0
    %1181 = vmatprep.subr.mxu0 0.0
    %1182 = vmatpush2.msra.mxu0 0.0
    %1183 = vmatprep.subr.mxu0 0.0
    %1184 = vmatpush2.msra.mxu0 0.0
    %1185 = vmatprep.subr.mxu0 0.0
    %1186 = vmatpush2.msra.mxu0 0.0
    %1187 = vmatprep.subr.mxu0 0.0
    %1188 = vmatpush2.msra.mxu0 0.0
    %1189 = vmatprep.subr.mxu0 0.0
    %1190 = vmatpush2.msra.mxu0 0.0
    %1191 = vmatprep.subr.mxu0 0.0
    %1192 = vmatpush2.msra.mxu0 0.0
    %1193 = vmatprep.subr.mxu0 0.0
    %1194 = vmatpush2.msra.mxu0 0.0
    %1195 = vmatprep.mubr.f32.mxu0 0.0
    %1196 = vmatmul.mubr.f32.gmra.mxu0 %v1126
    %v1197 = vpop.f32.mrf.mxu0
    %v1198 = vadd.f32 %v1124, %v1197
    %v1199 = vpop.f32.mrf.mxu0
    %1200 = vmatprep.mubr.f32.mxu0 0.0
    %1201 = vmatmul.mubr.f32.gmra.mxu0 %v1129
    %v1202 = vpop.f32.mrf.mxu0
    %v1203 = vadd.f32 %v1124, %v1202
    %v1204 = vpop.f32.mrf.mxu0
    %1205 = vdwg.mxu0
    %v1206 = vmax.f32 %v1198, 0.0
    %v1207 = vmax.f32 %v1203, 0.0
    %v1208 = vld [vmem:[%s2 + $0x20] sm:$0xff]
    %v1209 = vld [vmem:[%s2 + $0x28] sm:$0xff]
    %v1210 = vld [vmem:[%s2 + $0x30] sm:$0xff]
    %v1211 = vld [vmem:[%s2 + $0x38] sm:$0xff]
    %v1212 = vld [vmem:[%s2 + $0x40] sm:$0xff]
    %v1213 = vld [vmem:[%s2 + $0x48] sm:$0xff]
    %v1214 = vld [vmem:[%s2 + $0x50] sm:$0xff]
    %v1215 = vld [vmem:[%s2 + $0x58] sm:$0xff]
    %v1216 = vld [vmem:[%s2 + $0x60] sm:$0xff]
    %v1217 = vld [vmem:[%s2 + $0x68] sm:$0xff]
    %v1218 = vld [vmem:[%s2 + $0x70] sm:$0xff]
    %v1219 = vld [vmem:[%s2 + $0x78] sm:$0xff]
    %v1220 = vld [vmem:[%s2 + $0x80] sm:$0xff]
    %v1221 = vld [vmem:[%s2 + $0x88] sm:$0xff]
    %v1222 = vld [vmem:[%s2 + $0x90] sm:$0xff]
    %v1223 = vld [vmem:[%s2 + $0x98] sm:$0xff]
    %v1224 = vlaneseq
    %v1225 = vshrl.u32 %v1224, 7
    %v1226 = vsub.s32 0, %v1225
    %v1227 = vrot.slane %v28, %v1226
    %1228 = vmatprep.subr.mxu0 0.0
    %1229 = vmatpush1.msra.mxu0 %v1223
    %1230 = vmatprep.subr.mxu0 0.0
    %1231 = vmatpush1.msra.mxu0 %v1222
    %1232 = vmatprep.subr.mxu0 0.0
    %1233 = vmatpush1.msra.mxu0 %v1221
    %1234 = vmatprep.subr.mxu0 0.0
    %1235 = vmatpush1.msra.mxu0 %v1220
    %1236 = vmatprep.subr.mxu0 0.0
    %1237 = vmatpush1.msra.mxu0 %v1219
    %1238 = vmatprep.subr.mxu0 0.0
    %1239 = vmatpush1.msra.mxu0 %v1218
    %1240 = vmatprep.subr.mxu0 0.0
    %1241 = vmatpush1.msra.mxu0 %v1217
    %1242 = vmatprep.subr.mxu0 0.0
    %1243 = vmatpush1.msra.mxu0 %v1216
    %1244 = vmatprep.subr.mxu0 0.0
    %1245 = vmatpush1.msra.mxu0 %v1215
    %1246 = vmatprep.subr.mxu0 0.0
    %1247 = vmatpush1.msra.mxu0 %v1214
    %1248 = vmatprep.subr.mxu0 0.0
    %1249 = vmatpush1.msra.mxu0 %v1213
    %1250 = vmatprep.subr.mxu0 0.0
    %1251 = vmatpush1.msra.mxu0 %v1212
    %1252 = vmatprep.subr.mxu0 0.0
    %1253 = vmatpush1.msra.mxu0 %v1211
    %1254 = vmatprep.subr.mxu0 0.0
    %1255 = vmatpush1.msra.mxu0 %v1210
    %1256 = vmatprep.subr.mxu0 0.0
    %1257 = vmatpush1.msra.mxu0 %v1209
    %1258 = vmatprep.subr.mxu0 0.0
    %1259 = vmatpush1.msra.mxu0 %v1208
    %1260 = vmatprep.subr.mxu0 0.0
    %1261 = vmatpush2.msra.mxu0 0.0
    %1262 = vmatprep.subr.mxu0 0.0
    %1263 = vmatpush2.msra.mxu0 0.0
    %1264 = vmatprep.subr.mxu0 0.0
    %1265 = vmatpush2.msra.mxu0 0.0
    %1266 = vmatprep.subr.mxu0 0.0
    %1267 = vmatpush2.msra.mxu0 0.0
    %1268 = vmatprep.subr.mxu0 0.0
    %1269 = vmatpush2.msra.mxu0 0.0
    %1270 = vmatprep.subr.mxu0 0.0
    %1271 = vmatpush2.msra.mxu0 0.0
    %1272 = vmatprep.subr.mxu0 0.0
    %1273 = vmatpush2.msra.mxu0 0.0
    %1274 = vmatprep.subr.mxu0 0.0
    %1275 = vmatpush2.msra.mxu0 0.0
    %1276 = vmatprep.subr.mxu0 0.0
    %1277 = vmatpush2.msra.mxu0 0.0
    %1278 = vmatprep.subr.mxu0 0.0
    %1279 = vmatpush2.msra.mxu0 0.0
    %1280 = vmatprep.subr.mxu0 0.0
    %1281 = vmatpush2.msra.mxu0 0.0
    %1282 = vmatprep.subr.mxu0 0.0
    %1283 = vmatpush2.msra.mxu0 0.0
    %1284 = vmatprep.subr.mxu0 0.0
    %1285 = vmatpush2.msra.mxu0 0.0
    %1286 = vmatprep.subr.mxu0 0.0
    %1287 = vmatpush2.msra.mxu0 0.0
    %1288 = vmatprep.subr.mxu0 0.0
    %1289 = vmatpush2.msra.mxu0 0.0
    %1290 = vmatprep.subr.mxu0 0.0
    %1291 = vmatpush2.msra.mxu0 0.0
    %1292 = vmatprep.mubr.f32.mxu0 0.0
    %1293 = vmatmul.mubr.f32.gmra.mxu0 %v1206
    %v1294 = vpop.f32.mrf.mxu0
    %v1295 = vadd.f32 %v1227, %v1294
    %v1296 = vpop.f32.mrf.mxu0
    %1297 = vmatprep.mubr.f32.mxu0 0.0
    %1298 = vmatmul.mubr.f32.gmra.mxu0 %v1207
    %v1299 = vpop.f32.mrf.mxu0
    %v1300 = vadd.f32 %v1227, %v1299
    %v1301 = vpop.f32.mrf.mxu0
    %1302 = vdwg.mxu0
    %v1303 = vadd.f32 %v1077, %v1295
    %v1304 = vadd.f32 %v1078, %v1300
    %1305 = vst.msk [vmem:[#allocation2] sm:$0xff] %vm32, %v1303
    %1306 = vst.msk [vmem:[#allocation2 + $0x8] sm:$0xff] %vm32, %v1304
    // Predicated region
    $region22: #{tpu_custom_call.1} parent=1 // pred_check
      _
    $region23: #{tpu_custom_call.1} parent=1 // pred_check_branch
      %1308 = sbr.rel (0) target = $region25
    $region24: #{tpu_custom_call.1} parent=1 // pred_region
      %s1310 = ssub.s32 256, 256
      %1311 = vsyncadd [#allocation3], %s1310
      %s1312 = sshll.u32 [#allocation2], 4
      %s1313 = int_to_ptr.vmem [resolvable:$true] %s1312
      %1318 = dma.vmem_to_hbm [thread:$0]  %s1313, 256, %s5, [#allocation3], 128, 128, 8
    $region25: #{tpu_custom_call.1} parent=1 // pred_fallthru
      _
    // Predicated region
    $region26: #{tpu_custom_call.1} parent=1 // pred_check
      _
    $region27: #{tpu_custom_call.1} parent=1 // pred_check_branch
      %1320 = sbr.rel (0) target = $region29
    $region28: #{tpu_custom_call.1} parent=1 // pred_region
      %1321 = dma.done [#allocation3], 256
    $region29: #{tpu_custom_call.1} parent=1 // pred_fallthru
      _
    %1322 = vsyncpa [#allocation3], 1

</llo_original>
